<compile_context>
chip_gen: v6e
topology: v6e:2x2x1
jax: 0.10.0
libtpu: 0.0.40
codegen_flags: <defaults>
</compile_context>

<pallas_src>
import functools

import jax
import jax.numpy as jnp
from jax import lax
from jax.experimental import pallas as pl
from jax.experimental.pallas import tpu as pltpu

_LANE = 128
_SUBLANE = 8
_VMEM_LIMIT = 32 * 1024 * 1024  # conservative: fits default scoped VMEM on v5e/v6e/v7x


def _round_up(n, m):
    return ((n + m - 1) // m) * m


def _pick_tile(n, cap, align):
    """Largest tile <= cap that divides n and is `align`-aligned, else full dim."""
    if n <= cap:
        return n
    if n % align:
        return n  # rare fallback; large inputs should keep N aligned
    t = cap - cap % align
    t = max(t, align)
    while n % t:
        t -= align
    return t


# ---------------------------------------------------------------------------
# Kernel 1: tiled pairwise squared-distance matrix (KNN metric).
# ---------------------------------------------------------------------------
def _pairwise_dist_kernel(xr_ref, xc_ref, d_ref):
    xr = xr_ref[0]                                    # [TM, C]
    xc = xc_ref[0]                                    # [TN, C]
    sq_r = jnp.sum(xr * xr, axis=-1, keepdims=True)   # [TM, 1]
    sq_c = jnp.sum(xc * xc, axis=-1, keepdims=True)   # [TN, 1]
    # Contract dim 1 of both operands -> feeds the MXU with no transpose.
    inner = lax.dot_general(xr, xc, (((1,), (1,)), ((), ())),
                            preferred_element_type=jnp.float32)  # [TM, TN]
    d_ref[0] = (sq_r - 2.0 * inner + sq_c.T).astype(d_ref.dtype)


def pairwise_distance(x_bnc, *, tile_m=512, tile_n=512):
    B, N, C = x_bnc.shape
    tm = _pick_tile(N, tile_m, _SUBLANE)
    tn = _pick_tile(N, tile_n, _LANE)
    return pl.pallas_call(
        _pairwise_dist_kernel,
        out_shape=jax.ShapeDtypeStruct((B, N, N), jnp.float32),
        grid=(B, N // tm, N // tn),
        in_specs=[
            pl.BlockSpec((1, tm, C), lambda b, i, j: (b, i, 0)),   # row tile of x
            pl.BlockSpec((1, tn, C), lambda b, i, j: (b, j, 0)),   # column tile of x
        ],
        out_specs=pl.BlockSpec((1, tm, tn), lambda b, i, j: (b, i, j)),
        compiler_params=pltpu.CompilerParams(
            dimension_semantics=("parallel", "parallel", "parallel"),
            vmem_limit_bytes=_VMEM_LIMIT),
    )(x_bnc, x_bnc)


# ---------------------------------------------------------------------------
# Kernel 2: per-point transform.  One MXU pass with concatenated weights:
#   [y1+b | z] = x @ [W1 | W2] + [b | 0]
# ---------------------------------------------------------------------------
def _point_transform_kernel(x_ref, w_ref, b_ref, y1_ref, z_ref):
    cout = y1_ref.shape[-1]
    zy = jnp.dot(x_ref[0], w_ref[...],
                 preferred_element_type=jnp.float32) + b_ref[...]   # [TN, 2*Cout]
    y1_ref[0] = zy[:, :cout].astype(y1_ref.dtype)
    z_ref[0] = zy[:, cout:].astype(z_ref.dtype)


def point_transform(x_bnc, w_cat, b_cat, cout, *, tile_n=512):
    B, N, C = x_bnc.shape
    tn = _pick_tile(N, tile_n, _SUBLANE)
    return pl.pallas_call(
        _point_transform_kernel,
        out_shape=(jax.ShapeDtypeStruct((B, N, cout), jnp.float32),
                   jax.ShapeDtypeStruct((B, N, cout), jnp.float32)),
        grid=(B, N // tn),
        in_specs=[
            pl.BlockSpec((1, tn, C), lambda b, i: (b, i, 0)),
            pl.BlockSpec((C, 2 * cout), lambda b, i: (0, 0)),    # weights stay VMEM-resident
            pl.BlockSpec((1, 2 * cout), lambda b, i: (0, 0)),
        ],
        out_specs=(
            pl.BlockSpec((1, tn, cout), lambda b, i: (b, i, 0)),
            pl.BlockSpec((1, tn, cout), lambda b, i: (b, i, 0)),
        ),
        compiler_params=pltpu.CompilerParams(
            dimension_semantics=("parallel", "parallel"),
            vmem_limit_bytes=_VMEM_LIMIT),
    )(x_bnc, w_cat, b_cat)


# ---------------------------------------------------------------------------
# Kernel 3: EdgeConv epilogue.  out = ReLU((x@W1 + b) + max_k z_j - z_i)
# (max / bias / ReLU reordering is exact; no [N, K, Cout] intermediate.)
# ---------------------------------------------------------------------------
def _edge_combine_kernel(y1_ref, z_ref, zmax_ref, o_ref):
    o_ref[0] = jnp.maximum(y1_ref[0] + zmax_ref[0] - z_ref[0], 0.0).astype(o_ref.dtype)


def edge_combine(y1b, z, zmax, *, tile_n=512):
    B, N, C = y1b.shape
    tn = _pick_tile(N, tile_n, _SUBLANE)
    spec = pl.BlockSpec((1, tn, C), lambda b, i: (b, i, 0))
    return pl.pallas_call(
        _edge_combine_kernel,
        out_shape=jax.ShapeDtypeStruct((B, N, C), jnp.float32),
        grid=(B, N // tn),
        in_specs=[spec, spec, spec],
        out_specs=spec,
        compiler_params=pltpu.CompilerParams(
            dimension_semantics=("parallel", "parallel"),
            vmem_limit_bytes=_VMEM_LIMIT),
    )(y1b, z, zmax)


# ---------------------------------------------------------------------------
# PlainDynBlock2d forward (wrapper; graph glue stays in plain JAX)
# ---------------------------------------------------------------------------
@functools.partial(jax.jit, static_argnames=("k", "dilation"))
def plain_dyn_block2d(x_nchw, w1, w2, bias, *, k=9, dilation=1):
    """x_nchw: [B, C, N, 1] (PyTorch layout). Returns [B, C, N, 1]."""
    B, C, N, W = x_nchw.shape
    assert W == 1, "expected point-cloud layout [B, C, N, 1]"
    Cout = w1.shape[1]

    x_bnc = jnp.transpose(x_nchw[..., 0], (0, 2, 1)).astype(jnp.float32)   # [B, N, C]

    # Lane-dense channel padding (exact: zero features, zero weight rows/cols).
    Cp = _round_up(C, _LANE)
    Coutp = _round_up(Cout, _LANE)
    xp = jnp.pad(x_bnc, ((0, 0), (0, 0), (0, Cp - C)))
    w1p = jnp.pad(w1, ((0, Cp - C), (0, Coutp - Cout)))
    w2p = jnp.pad(w2, ((0, Cp - C), (0, Coutp - Cout)))
    biasp = jnp.pad(bias, ((0, 0), (0, Coutp - Cout)))
    w_cat = jnp.concatenate([w1p, w2p], axis=1)                   # [Cp, 2*Coutp]
    b_cat = jnp.concatenate([biasp, jnp.zeros_like(biasp)], axis=1)

    # ---- Dilated KNN graph (self-loop comes for free: self-distance ~ 0). ----
    # Distances kept in f32 so the neighbor ranking matches the reference exactly.
    dist = pairwise_distance(xp)                                  # [B, N, N]
    # TODO(synk): fuse a streaming running-top-k into the distance kernel to avoid
    # the [B,N,N] HBM round-trip through lax.top_k at large N.
    _, nn_idx = lax.top_k(-dist, k * dilation)                    # [B, N, k*d]
    nn_idx = nn_idx[..., ::dilation]                              # [B, N, k]
    # TODO(synk): stochastic/epsilon dilation (random neighbor subsampling) is a
    # no-op with the default stochastic=False and is not implemented.

    # ---- EdgeConv via z-trick (per-point matmul, K-invariant epilogue). ----
    y1b, z = point_transform(xp, w_cat, b_cat, Coutp)             # [B, N, Coutp] x 2
    # Gather rows of z (not full edge features) and reduce over k in the wrapper
    # so XLA can fuse gather + reduce-max without a [B,N,K,C] HBM round-trip.
    # TODO(synk): in-kernel DMA gather of z rows via scalar-prefetched nn_idx.
    z_j = jax.vmap(lambda zb, ib: zb[ib])(z, nn_idx)              # [B, N, k, Coutp]
    zmax = jnp.max(z_j, axis=2)                                   # [B, N, Coutp]

    out = edge_combine(y1b, z, zmax)                              # [B, N, Coutp]
    out = out[..., :Cout]                                         # drop channel padding
    return jnp.transpose(out, (0, 2, 1))[..., None]               # [B, Cout, N, 1]


# ---------------------------------------------------------------------------
# Pure-JAX reference (sanity check of the Pallas path)
# ---------------------------------------------------------------------------
def reference_forward(x_nchw, w1, w2, bias, *, k=9):
    B, C, N, _ = x_nchw.shape
    x_bnc = jnp.transpose(x_nchw[..., 0], (0, 2, 1))
    sq = jnp.sum(x_bnc * x_bnc, axis=-1, keepdims=True)
    dist = sq - 2.0 * jnp.einsum("bnc,bmc->bnm", x_bnc, x_bnc) + jnp.swapaxes(sq, 1, 2)
    _, nn_idx = jax.lax.top_k(-dist, k)
    x_j = jax.vmap(lambda xb, ib: xb[ib])(x_bnc, nn_idx)          # [B, N, k, C]
    x_i = jnp.broadcast_to(x_bnc[:, :, None, :], x_j.shape)
    feat = jnp.concatenate([x_i, x_j - x_i], axis=-1)             # [B, N, k, 2C]
    w_full = jnp.concatenate([w1, w2], axis=0)                    # [2C, Cout]
    y = jnp.maximum(jnp.einsum("bnkc,cd->bnkd", feat, w_full) + bias[0], 0.0)
    out = jnp.max(y, axis=2)                                      # [B, N, Cout]
    return jnp.transpose(out, (0, 2, 1))[..., None]


if __name__ == "__main__":
    B, C, N, K = 2, 16, 16, 9   # PlainDynBlock2d: in_channels == out_channels

    key = jax.random.PRNGKey(0)
    kx, kw1, kw2, kb = jax.random.split(key, 4)

    # Conv2d 1x1 weight split: W1 acts on x_i, W2 on (x_j - x_i); bias [1, C].
    scale = 1.0 / jnp.sqrt(2.0 * C)
    w1 = jax.random.uniform(kw1, (C, C), jnp.float32, -scale, scale)
    w2 = jax.random.uniform(kw2, (C, C), jnp.float32, -scale, scale)
    bias = jax.random.uniform(kb, (1, C), jnp.float32, -scale, scale)

    x = jax.random.normal(kx, (B, C, N, 1), dtype=jnp.float32)

    out = jax.block_until_ready(plain_dyn_block2d(x, w1, w2, bias, k=K, dilation=1))
    ref = jax.block_until_ready(reference_forward(x, w1, w2, bias, k=K))

    assert out.shape == (B, C, N, 1), out.shape
    assert jnp.allclose(out, ref, atol=1e-4, rtol=1e-4), \
        float(jnp.max(jnp.abs(out - ref)))

    print("KERNEL_OK")
</pallas_src>

<mosaic_0001>
module attributes {stable_mosaic.version = 11 : i64} {
  func.func @_pairwise_dist_kernel(%arg0: i32, %arg1: i32, %arg2: i32, %arg3: memref<1x16x128xf32, #tpu.memory_space<vmem>>, %arg4: memref<1x16x128xf32, #tpu.memory_space<vmem>>, %arg5: memref<1x16x16xf32, #tpu.memory_space<vmem>>) attributes {dimension_semantics = [#tpu.dimension_semantics<parallel>, #tpu.dimension_semantics<parallel>, #tpu.dimension_semantics<parallel>], iteration_bounds = array<i64: 2, 1, 1>, scalar_prefetch = 0 : i64, scratch_operands = 0 : i64, tpu.core_type = #tpu.core_type<tc>, window_params = [{transform_indices = @transform_0, window_bounds = array<i64: 1, 16, 128>}, {transform_indices = @transform_1, window_bounds = array<i64: 1, 16, 128>}, {transform_indices = @transform_2, window_bounds = array<i64: 1, 16, 16>}]} {
    %c0 = arith.constant 0 : index
    %c0_0 = arith.constant 0 : index
    %c0_1 = arith.constant 0 : index
    %0 = vector.load %arg3[%c0, %c0_0, %c0_1] : memref<1x16x128xf32, #tpu.memory_space<vmem>>, vector<1x16x128xf32>
    %1 = vector.shape_cast %0 : vector<1x16x128xf32> to vector<16x128xf32>
    %c0_2 = arith.constant 0 : index
    %c0_3 = arith.constant 0 : index
    %c0_4 = arith.constant 0 : index
    %2 = vector.load %arg4[%c0_2, %c0_3, %c0_4] : memref<1x16x128xf32, #tpu.memory_space<vmem>>, vector<1x16x128xf32>
    %3 = vector.shape_cast %2 : vector<1x16x128xf32> to vector<16x128xf32>
    %4 = arith.mulf %1, %1 : vector<16x128xf32>
    %cst = arith.constant dense<0.000000e+00> : vector<16xf32>
    %5 = vector.multi_reduction <add>, %4, %cst [1] : vector<16x128xf32> to vector<16xf32>
    %6 = vector.shape_cast %5 : vector<16xf32> to vector<16x1xf32>
    %7 = arith.mulf %3, %3 : vector<16x128xf32>
    %cst_5 = arith.constant dense<0.000000e+00> : vector<16xf32>
    %8 = vector.multi_reduction <add>, %7, %cst_5 [1] : vector<16x128xf32> to vector<16xf32>
    %9 = vector.shape_cast %8 : vector<16xf32> to vector<16x1xf32>
    %cst_6 = arith.constant dense<0.000000e+00> : vector<16x16xf32>
    %10 = tpu.matmul %1, %3, %cst_6 {dimension_numbers = #tpu.dot_dimension_numbers<[1], [1], [0], [0], [0, 0, 1, 0], [], []>} : vector<16x128xf32>, vector<16x128xf32>, vector<16x16xf32> -> vector<16x16xf32>
    %cst_7 = arith.constant 2.000000e+00 : f32
    %11 = vector.broadcast %cst_7 : f32 to vector<16x16xf32>
    %12 = arith.mulf %11, %10 : vector<16x16xf32>
    %13 = vector.broadcast %6 : vector<16x1xf32> to vector<16x16xf32>
    %14 = arith.subf %13, %12 : vector<16x16xf32>
    %15 = tpu.transpose %9, [1, 0] : vector<16x1xf32> -> vector<1x16xf32>
    %16 = vector.broadcast %15 : vector<1x16xf32> to vector<16x16xf32>
    %17 = arith.addf %14, %16 : vector<16x16xf32>
    %c0_8 = arith.constant 0 : index
    %c0_9 = arith.constant 0 : index
    %c0_10 = arith.constant 0 : index
    %18 = vector.load %arg5[%c0_8, %c0_9, %c0_10] : memref<1x16x16xf32, #tpu.memory_space<vmem>>, vector<1x16x16xf32>
    %19 = vector.shape_cast %18 : vector<1x16x16xf32> to vector<16x16xf32>
    %20 = vector.shape_cast %17 : vector<16x16xf32> to vector<1x16x16xf32>
    tpu.vector_store %arg5[%c0_8, %c0_9, %c0_10], %20 {strides = array<i32>} : memref<1x16x16xf32, #tpu.memory_space<vmem>>, vector<1x16x16xf32>,
    return
  }
  func.func @transform_0(%arg0: i32, %arg1: i32, %arg2: i32) -> (i32, i32, i32) {
    %c0_i32 = arith.constant 0 : i32
    %c0_i32_0 = arith.constant 0 : i32
    return %arg0, %arg1, %c0_i32 : i32, i32, i32
  }
  func.func @transform_1(%arg0: i32, %arg1: i32, %arg2: i32) -> (i32, i32, i32) {
    %c0_i32 = arith.constant 0 : i32
    %c0_i32_0 = arith.constant 0 : i32
    return %arg0, %arg2, %c0_i32 : i32, i32, i32
  }
  func.func @transform_2(%arg0: i32, %arg1: i32, %arg2: i32) -> (i32, i32, i32) {
    %c0_i32 = arith.constant 0 : i32
    return %arg0, %arg1, %arg2 : i32, i32, i32
  }
}

module attributes {stable_mosaic.version = 11 : i64} {
  func.func @_point_transform_kernel(%arg0: i32, %arg1: i32, %arg2: memref<1x16x128xf32, #tpu.memory_space<vmem>>, %arg3: memref<128x256xf32, #tpu.memory_space<vmem>>, %arg4: memref<1x256xf32, #tpu.memory_space<vmem>>, %arg5: memref<1x16x128xf32, #tpu.memory_space<vmem>>, %arg6: memref<1x16x128xf32, #tpu.memory_space<vmem>>) attributes {dimension_semantics = [#tpu.dimension_semantics<parallel>, #tpu.dimension_semantics<parallel>], iteration_bounds = array<i64: 2, 1>, scalar_prefetch = 0 : i64, scratch_operands = 0 : i64, tpu.core_type = #tpu.core_type<tc>, window_params = [{transform_indices = @transform_0, window_bounds = array<i64: 1, 16, 128>}, {pipeline_mode = #tpu.pipeline_mode<synchronous>, transform_indices = @transform_1, window_bounds = array<i64: 128, 256>}, {pipeline_mode = #tpu.pipeline_mode<synchronous>, transform_indices = @transform_2, window_bounds = array<i64: 1, 256>}, {transform_indices = @transform_3, window_bounds = array<i64: 1, 16, 128>}, {transform_indices = @transform_4, window_bounds = array<i64: 1, 16, 128>}]} {
    %c0 = arith.constant 0 : index
    %c0_0 = arith.constant 0 : index
    %c0_1 = arith.constant 0 : index
    %0 = vector.load %arg2[%c0, %c0_0, %c0_1] : memref<1x16x128xf32, #tpu.memory_space<vmem>>, vector<1x16x128xf32>
    %1 = vector.shape_cast %0 : vector<1x16x128xf32> to vector<16x128xf32>
    %c0_2 = arith.constant 0 : index
    %c0_3 = arith.constant 0 : index
    %2 = vector.load %arg3[%c0_2, %c0_3] : memref<128x256xf32, #tpu.memory_space<vmem>>, vector<128x256xf32>
    %cst = arith.constant dense<0.000000e+00> : vector<16x256xf32>
    %3 = tpu.matmul %1, %2, %cst {dimension_numbers = #tpu.dot_dimension_numbers<[1], [0], [0], [1], [0, 0, 1, 1], [], []>} : vector<16x128xf32>, vector<128x256xf32>, vector<16x256xf32> -> vector<16x256xf32>
    %c0_4 = arith.constant 0 : index
    %c0_5 = arith.constant 0 : index
    %4 = vector.load %arg4[%c0_4, %c0_5] : memref<1x256xf32, #tpu.memory_space<vmem>>, vector<1x256xf32>
    %5 = vector.broadcast %4 : vector<1x256xf32> to vector<16x256xf32>
    %6 = arith.addf %3, %5 : vector<16x256xf32>
    %7 = vector.extract_strided_slice %6 {offsets = [0, 0], sizes = [16, 128], strides = [1, 1]} : vector<16x256xf32> to vector<16x128xf32>
    %c0_6 = arith.constant 0 : index
    %c0_7 = arith.constant 0 : index
    %c0_8 = arith.constant 0 : index
    %8 = vector.load %arg5[%c0_6, %c0_7, %c0_8] : memref<1x16x128xf32, #tpu.memory_space<vmem>>, vector<1x16x128xf32>
    %9 = vector.shape_cast %8 : vector<1x16x128xf32> to vector<16x128xf32>
    %10 = vector.shape_cast %7 : vector<16x128xf32> to vector<1x16x128xf32>
    tpu.vector_store %arg5[%c0_6, %c0_7, %c0_8], %10 {strides = array<i32>} : memref<1x16x128xf32, #tpu.memory_space<vmem>>, vector<1x16x128xf32>,
    %11 = vector.extract_strided_slice %6 {offsets = [0, 128], sizes = [16, 128], strides = [1, 1]} : vector<16x256xf32> to vector<16x128xf32>
    %c0_9 = arith.constant 0 : index
    %c0_10 = arith.constant 0 : index
    %c0_11 = arith.constant 0 : index
    %12 = vector.load %arg6[%c0_9, %c0_10, %c0_11] : memref<1x16x128xf32, #tpu.memory_space<vmem>>, vector<1x16x128xf32>
    %13 = vector.shape_cast %12 : vector<1x16x128xf32> to vector<16x128xf32>
    %14 = vector.shape_cast %11 : vector<16x128xf32> to vector<1x16x128xf32>
    tpu.vector_store %arg6[%c0_9, %c0_10, %c0_11], %14 {strides = array<i32>} : memref<1x16x128xf32, #tpu.memory_space<vmem>>, vector<1x16x128xf32>,
    return
  }
  func.func @transform_0(%arg0: i32, %arg1: i32) -> (i32, i32, i32) {
    %c0_i32 = arith.constant 0 : i32
    %c0_i32_0 = arith.constant 0 : i32
    return %arg0, %arg1, %c0_i32 : i32, i32, i32
  }
  func.func @transform_1(%arg0: i32, %arg1: i32) -> (i32, i32) {
    %c0_i32 = arith.constant 0 : i32
    %c0_i32_0 = arith.constant 0 : i32
    %c0_i32_1 = arith.constant 0 : i32
    return %c0_i32, %c0_i32_0 : i32, i32
  }
  func.func @transform_2(%arg0: i32, %arg1: i32) -> (i32, i32) {
    %c0_i32 = arith.constant 0 : i32
    %c0_i32_0 = arith.constant 0 : i32
    %c0_i32_1 = arith.constant 0 : i32
    return %c0_i32, %c0_i32_0 : i32, i32
  }
  func.func @transform_3(%arg0: i32, %arg1: i32) -> (i32, i32, i32) {
    %c0_i32 = arith.constant 0 : i32
    %c0_i32_0 = arith.constant 0 : i32
    return %arg0, %arg1, %c0_i32 : i32, i32, i32
  }
  func.func @transform_4(%arg0: i32, %arg1: i32) -> (i32, i32, i32) {
    %c0_i32 = arith.constant 0 : i32
    %c0_i32_0 = arith.constant 0 : i32
    return %arg0, %arg1, %c0_i32 : i32, i32, i32
  }
}

module attributes {stable_mosaic.version = 11 : i64} {
  func.func @_edge_combine_kernel(%arg0: i32, %arg1: i32, %arg2: memref<1x16x128xf32, #tpu.memory_space<vmem>>, %arg3: memref<1x16x128xf32, #tpu.memory_space<vmem>>, %arg4: memref<1x16x128xf32, #tpu.memory_space<vmem>>, %arg5: memref<1x16x128xf32, #tpu.memory_space<vmem>>) attributes {dimension_semantics = [#tpu.dimension_semantics<parallel>, #tpu.dimension_semantics<parallel>], iteration_bounds = array<i64: 2, 1>, scalar_prefetch = 0 : i64, scratch_operands = 0 : i64, tpu.core_type = #tpu.core_type<tc>, window_params = [{transform_indices = @transform_0, window_bounds = array<i64: 1, 16, 128>}, {transform_indices = @transform_1, window_bounds = array<i64: 1, 16, 128>}, {transform_indices = @transform_2, window_bounds = array<i64: 1, 16, 128>}, {transform_indices = @transform_3, window_bounds = array<i64: 1, 16, 128>}]} {
    %c0 = arith.constant 0 : index
    %c0_0 = arith.constant 0 : index
    %c0_1 = arith.constant 0 : index
    %0 = vector.load %arg2[%c0, %c0_0, %c0_1] : memref<1x16x128xf32, #tpu.memory_space<vmem>>, vector<1x16x128xf32>
    %1 = vector.shape_cast %0 : vector<1x16x128xf32> to vector<16x128xf32>
    %c0_2 = arith.constant 0 : index
    %c0_3 = arith.constant 0 : index
    %c0_4 = arith.constant 0 : index
    %2 = vector.load %arg4[%c0_2, %c0_3, %c0_4] : memref<1x16x128xf32, #tpu.memory_space<vmem>>, vector<1x16x128xf32>
    %3 = vector.shape_cast %2 : vector<1x16x128xf32> to vector<16x128xf32>
    %4 = arith.addf %1, %3 : vector<16x128xf32>
    %c0_5 = arith.constant 0 : index
    %c0_6 = arith.constant 0 : index
    %c0_7 = arith.constant 0 : index
    %5 = vector.load %arg3[%c0_5, %c0_6, %c0_7] : memref<1x16x128xf32, #tpu.memory_space<vmem>>, vector<1x16x128xf32>
    %6 = vector.shape_cast %5 : vector<1x16x128xf32> to vector<16x128xf32>
    %7 = arith.subf %4, %6 : vector<16x128xf32>
    %cst = arith.constant 0.000000e+00 : f32
    %8 = vector.broadcast %cst : f32 to vector<16x128xf32>
    %9 = arith.maximumf %7, %8 : vector<16x128xf32>
    %c0_8 = arith.constant 0 : index
    %c0_9 = arith.constant 0 : index
    %c0_10 = arith.constant 0 : index
    %10 = vector.load %arg5[%c0_8, %c0_9, %c0_10] : memref<1x16x128xf32, #tpu.memory_space<vmem>>, vector<1x16x128xf32>
    %11 = vector.shape_cast %10 : vector<1x16x128xf32> to vector<16x128xf32>
    %12 = vector.shape_cast %9 : vector<16x128xf32> to vector<1x16x128xf32>
    tpu.vector_store %arg5[%c0_8, %c0_9, %c0_10], %12 {strides = array<i32>} : memref<1x16x128xf32, #tpu.memory_space<vmem>>, vector<1x16x128xf32>,
    return
  }
  func.func @transform_0(%arg0: i32, %arg1: i32) -> (i32, i32, i32) {
    %c0_i32 = arith.constant 0 : i32
    %c0_i32_0 = arith.constant 0 : i32
    return %arg0, %arg1, %c0_i32 : i32, i32, i32
  }
  func.func @transform_1(%arg0: i32, %arg1: i32) -> (i32, i32, i32) {
    %c0_i32 = arith.constant 0 : i32
    %c0_i32_0 = arith.constant 0 : i32
    return %arg0, %arg1, %c0_i32 : i32, i32, i32
  }
  func.func @transform_2(%arg0: i32, %arg1: i32) -> (i32, i32, i32) {
    %c0_i32 = arith.constant 0 : i32
    %c0_i32_0 = arith.constant 0 : i32
    return %arg0, %arg1, %c0_i32 : i32, i32, i32
  }
  func.func @transform_3(%arg0: i32, %arg1: i32) -> (i32, i32, i32) {
    %c0_i32 = arith.constant 0 : i32
    %c0_i32_0 = arith.constant 0 : i32
    return %arg0, %arg1, %c0_i32 : i32, i32, i32
  }
}

</mosaic_0001>

<llo_original>
// kernel: neg.1
$region0: #{neg.1}
  #allocation0 [shape = 's32[1]{0}', space=sflag, size = 0x4, scoped, tag = 'scoped memory for neg.1']
  %s0 = inlined_call_operand.vmem [shape: f32[2,16,16], index: 0, kind: input, shape index: {}]
  %s1 = inlined_call_operand.vmem [shape: f32[2,16,16], index: 1, kind: output, shape index: {}]
  %v2 = vld [vmem:[%s0] sm:$0xff]
  %3 = xla_tuple %v2
  %4 = xla_tuple %3
  %v5 = vxor.u32 %v2, 2147483648
  %6 = xla_tuple %v5
  %7 = vst [vmem:[%s1] sm:$0xff] %v5
  %s8 = scalar_lea.vmem %s0, 16
  %v9 = vld [vmem:[%s8] sm:$0xff]
  %10 = xla_tuple %v9
  %11 = xla_tuple %10
  %v12 = vxor.u32 %v9, 2147483648
  %13 = xla_tuple %v12
  %s14 = scalar_lea.vmem %s1, 16
  %15 = vst [vmem:[%s14] sm:$0xff] %v12
  %s16 = scalar_lea.vmem %s0, 8
  %v17 = vld [vmem:[%s16] sm:$0xff]
  %18 = xla_tuple %v17
  %19 = xla_tuple %18
  %v20 = vxor.u32 %v17, 2147483648
  %21 = xla_tuple %v20
  %s22 = scalar_lea.vmem %s1, 8
  %23 = vst [vmem:[%s22] sm:$0xff] %v20
  %s24 = scalar_lea.vmem %s0, 24
  %v25 = vld [vmem:[%s24] sm:$0xff]
  %26 = xla_tuple %v25
  %27 = xla_tuple %26
  %v28 = vxor.u32 %v25, 2147483648
  %29 = xla_tuple %v28
  %s30 = scalar_lea.vmem %s1, 24
  %31 = vst [vmem:[%s30] sm:$0xff] %v28

// kernel: plain_dyn_block2d.3
$region0: #{plain_dyn_block2d.3}
  #allocation0 [shape = 'u32[]', space=smem, size = 0x4, offset = 0x4, fixed_abs, tag = 'smem constant byte address 0x4 - core index']
  #allocation1 [shape = 'u32[144,128]{1,0:T(1,128)}', space=vmem, size = 0x12000, scoped, tag = 'internal scratch']
  %s0 = inlined_call_operand.vmem [shape: f32[2,16,128], index: 0, kind: input, shape index: {}, may-alias: {0,1}]
  %s1 = inlined_call_operand.vmem [shape: f32[2,16,128], index: 1, kind: input, shape index: {}, may-alias: {0,1}]
  %s2 = inlined_call_operand.vmem [shape: f32[2,16,16], index: 2, kind: output, shape index: {}]
  %s3 = sld [smem:[#allocation0]]
  $region41: #{plain_dyn_block2d.3} parent=0
    _
  %s5 = ssub.s32 1, %s3
  %s6 = scalar_select 0, %s5, %s3
  loop: start=0, step=1, limit=4
  $region2: #{plain_dyn_block2d.3} parent=0 // loop_pre_header
    _
  $region3: #{plain_dyn_block2d.3} parent=0 // loop_header
    %s8 = sphi 0, %s12
    %p9 = scmp.ge.s32.totalorder %s8, 4
    %s15 = sphi 0, %s34
    %s16 = sphi 0, %s30
    %s17 = sphi 0, %s26
    %s18 = sphi 0, %s15
    %s19 = sphi 0, %s16
    %s20 = sphi 0, %s17
    %s21 = sphi 0, %s18
    %s22 = sphi 0, %s19
    %s23 = sphi 0, %s20
    %s39 = sphi 0, %s41
    %s42 = sphi 0, %s39
    %s43 = sphi 0, %s42
    %s59 = sphi 0, %s43
    %s67 = sphi 0, %s69
    %s70 = sphi 0, %s67
    %s71 = sphi 0, %s70
    %s87 = sphi 0, %s71
    %s97 = sphi 0, %s99
    %s100 = sphi 0, %s97
    %s101 = sphi 0, %s100
    %s117 = sphi 0, %s101
  $region4: #{plain_dyn_block2d.3} parent=0 // loop_header_branch
    %11 = sbr.rel (%p9) target = $region8
  $region5: #{plain_dyn_block2d.3} parent=0 // loop_body
    %s13 = ssub.s32 %s8, 1
    %s14 = ssub.s32 %s8, 2
    %s24 = sadd.s32 1, %s17
    %p25 = scmp.ge.s32.totalorder %s24, 1
    %s26 = scalar_select %p25, 0, %s24
    %s27 = sadd.s32 1, %s16
    %s28 = scalar_select %p25, %s27, %s16
    %p29 = scmp.ge.s32.totalorder %s28, 1
    %s30 = scalar_select %p29, 0, %s28
    %s31 = sadd.s32 1, %s15
    %s32 = scalar_select %p29, %s31, %s15
    %p33 = scmp.ge.s32.totalorder %s32, 2
    %s34 = scalar_select %p33, 0, %s32
    %s35 = ssub.s32 %s15, %s34
    %s36 = ssub.s32 %s16, %s30
    %s37 = sor.u32 %s35, %s36
    %p38 = scmp.eq.s32.totalorder %s37, 0
    %s40 = sadd.s32 %s39, 1
    %s41 = scalar_select %p38, %s39, %s40
    %p44 = pneg %p38
    %p45 = scmp.eq.s32.totalorder %s8, 1
    %p46 = por %p44, %p45
    %p47 = scmp.ne.s32.totalorder %s39, %s42
    %p48 = scmp.eq.s32.totalorder %s8, 0
    %p49 = por %p47, %p48
    %p50 = scmp.ne.s32.totalorder %s39, %s42
    %p51 = scmp.eq.s32.totalorder %s13, 1
    %p52 = por %p50, %p51
    %p53 = scmp.ne.s32.totalorder %s42, %s43
    %p54 = scmp.eq.s32.totalorder %s13, 0
    %p55 = por %p53, %p54
    %p56 = scmp.ne.s32.totalorder %s42, %s43
    %p57 = scmp.eq.s32.totalorder %s14, 1
    %p58 = por %p56, %p57
    %p60 = scmp.ne.s32.totalorder %s43, %s59
    %p61 = scmp.eq.s32.totalorder %s14, 0
    %p62 = por %p60, %p61
    %s63 = ssub.s32 %s15, %s34
    %s64 = ssub.s32 %s17, %s26
    %s65 = sor.u32 %s63, %s64
    %p66 = scmp.eq.s32.totalorder %s65, 0
    %s68 = sadd.s32 %s67, 1
    %s69 = scalar_select %p66, %s67, %s68
    %p72 = pneg %p66
    %p73 = scmp.eq.s32.totalorder %s8, 1
    %p74 = por %p72, %p73
    %p75 = scmp.ne.s32.totalorder %s67, %s70
    %p76 = scmp.eq.s32.totalorder %s8, 0
    %p77 = por %p75, %p76
    %p78 = scmp.ne.s32.totalorder %s67, %s70
    %p79 = scmp.eq.s32.totalorder %s13, 1
    %p80 = por %p78, %p79
    %p81 = scmp.ne.s32.totalorder %s70, %s71
    %p82 = scmp.eq.s32.totalorder %s13, 0
    %p83 = por %p81, %p82
    %p84 = scmp.ne.s32.totalorder %s70, %s71
    %p85 = scmp.eq.s32.totalorder %s14, 1
    %p86 = por %p84, %p85
    %p88 = scmp.ne.s32.totalorder %s71, %s87
    %p89 = scmp.eq.s32.totalorder %s14, 0
    %p90 = por %p88, %p89
    %s91 = ssub.s32 %s15, %s34
    %s92 = ssub.s32 %s16, %s30
    %s93 = sor.u32 %s91, %s92
    %s94 = ssub.s32 %s17, %s26
    %s95 = sor.u32 %s93, %s94
    %p96 = scmp.eq.s32.totalorder %s95, 0
    %s98 = sadd.s32 %s97, 1
    %s99 = scalar_select %p96, %s97, %s98
    %p102 = pneg %p96
    %p103 = scmp.eq.s32.totalorder %s8, 1
    %p104 = por %p102, %p103
    %p105 = scmp.ne.s32.totalorder %s97, %s100
    %p106 = scmp.eq.s32.totalorder %s8, 0
    %p107 = por %p105, %p106
    %p108 = scmp.ne.s32.totalorder %s97, %s100
    %p109 = scmp.eq.s32.totalorder %s13, 1
    %p110 = por %p108, %p109
    %p111 = scmp.ne.s32.totalorder %s100, %s101
    %p112 = scmp.eq.s32.totalorder %s13, 0
    %p113 = por %p111, %p112
    %p114 = scmp.ne.s32.totalorder %s100, %s101
    %p115 = scmp.eq.s32.totalorder %s14, 1
    %p116 = por %p114, %p115
    %p118 = scmp.ne.s32.totalorder %s101, %s117
    %p119 = scmp.eq.s32.totalorder %s14, 0
    %p120 = por %p118, %p119
    %p121 = scmp.le.s32.totalorder 1, %s8
    %p122 = scmp.lt.s32.totalorder %s8, 3
    %p123 = pnand %p121, %p122
    %p124 = pneg %p123
    // Predicated region
    $region9: #{plain_dyn_block2d.3} parent=5 // pred_check
      _
    $region10: #{plain_dyn_block2d.3} parent=5 // pred_check_branch
      %126 = sbr.rel (%p123) target = $region12
    $region11: #{plain_dyn_block2d.3} parent=5 // pred_region
      %s127 = ssub.s32 %s8, 1
    $region12: #{plain_dyn_block2d.3} parent=5 // pred_fallthru
      _
    %p128 = scmp.lt.s32.totalorder %s8, 2
    // Predicated region
    $region13: #{plain_dyn_block2d.3} parent=5 // pred_check
      %p129 = pneg %p128
    $region14: #{plain_dyn_block2d.3} parent=5 // pred_check_branch
      %131 = sbr.rel (%p129) target = $region16
    $region15: #{plain_dyn_block2d.3} parent=5 // pred_region
      // Predicated region
      $region17: #{plain_dyn_block2d.3} parent=15 // pred_check
        %p132 = pneg %p49
      $region18: #{plain_dyn_block2d.3} parent=15 // pred_check_branch
        %134 = sbr.rel (%p132) target = $region20
      $region19: #{plain_dyn_block2d.3} parent=15 // pred_region
        %s135 = smul.u32 2, %s16
        %p136 = scmp.lt.s32.totalorder %s15, 1
        %s137 = scalar_select %p136, %s15, 1
        %p138 = scmp.lt.s32.totalorder %s135, 1
        %s139 = scalar_select %p138, %s135, 1
        %s140 = smul.addr %s137, 2
        %s141 = sadd.s32 %s139, %s140
        %s142 = smul.addr %s141, 8
        %s143 = scalar_lea.vmem %s0, %s142
        %s144 = smul.u32 2, %s16
      $region20: #{plain_dyn_block2d.3} parent=15 // pred_fallthru
        _
      // Predicated region
      $region21: #{plain_dyn_block2d.3} parent=15 // pred_check
        %p145 = pneg %p77
      $region22: #{plain_dyn_block2d.3} parent=15 // pred_check_branch
        %147 = sbr.rel (%p145) target = $region24
      $region23: #{plain_dyn_block2d.3} parent=15 // pred_region
        %s148 = smul.u32 2, %s17
        %p149 = scmp.lt.s32.totalorder %s15, 1
        %s150 = scalar_select %p149, %s15, 1
        %p151 = scmp.lt.s32.totalorder %s148, 1
        %s152 = scalar_select %p151, %s148, 1
        %s153 = smul.addr %s150, 2
        %s154 = sadd.s32 %s152, %s153
        %s155 = smul.addr %s154, 8
        %s156 = scalar_lea.vmem %s1, %s155
        %s157 = smul.u32 2, %s17
      $region24: #{plain_dyn_block2d.3} parent=15 // pred_fallthru
        _
    $region16: #{plain_dyn_block2d.3} parent=5 // pred_fallthru
      _
    %p158 = scmp.le.s32.totalorder 1, %s8
    %p159 = scmp.lt.s32.totalorder %s8, 3
    %p160 = pnand %p158, %p159
    %p161 = pneg %p160
    // Predicated region
    $region25: #{plain_dyn_block2d.3} parent=5 // pred_check
      _
    $region26: #{plain_dyn_block2d.3} parent=5 // pred_check_branch
      %163 = sbr.rel (%p160) target = $region28
    $region27: #{plain_dyn_block2d.3} parent=5 // pred_region
      %s164 = ssub.s32 %s8, 1
      %s165 = smul.u32 2, %s19
      %p166 = scmp.lt.s32.totalorder %s18, 1
      %s167 = scalar_select %p166, %s18, 1
      %p168 = scmp.lt.s32.totalorder %s165, 1
      %s169 = scalar_select %p168, %s165, 1
      %s170 = smul.addr %s167, 2
      %s171 = sadd.s32 %s169, %s170
      %s172 = smul.addr %s171, 8
      %s173 = scalar_lea.vmem %s0, %s172
      %p174 = pneg %p55
      %p175 = pneg %p52
      %s176 = smul.u32 2, %s20
      %p177 = scmp.lt.s32.totalorder %s18, 1
      %s178 = scalar_select %p177, %s18, 1
      %p179 = scmp.lt.s32.totalorder %s176, 1
      %s180 = scalar_select %p179, %s176, 1
      %s181 = smul.addr %s178, 2
      %s182 = sadd.s32 %s180, %s181
      %s183 = smul.addr %s182, 8
      %s184 = scalar_lea.vmem %s1, %s183
      %p185 = pneg %p83
      %p186 = pneg %p80
      %p187 = pneg %p113
      %p188 = pneg %p110
      %s189 = smul.u32 2, %s19
      %p190 = scmp.lt.s32.totalorder %s18, 1
      %s191 = scalar_select %p190, %s18, 1
      %p192 = scmp.lt.s32.totalorder %s189, 1
      %s193 = scalar_select %p192, %s189, 1
      %p194 = scmp.lt.s32.totalorder %s20, 0
      %s195 = scalar_select %p194, %s20, 0
      %s196 = sadd.s32 %s195, %s193
      %s197 = smul.addr %s191, 2
      %s198 = sadd.s32 %s196, %s197
      %s199 = smul.addr %s198, 8
      %s200 = scalar_lea.vmem %s2, %s199
      %s201 = smul.u32 2, %s19
      %p202 = scmp.lt.s32.totalorder %s18, 1
      %s203 = scalar_select %p202, %s18, 1
      %p204 = scmp.lt.s32.totalorder %s201, 1
      %s205 = scalar_select %p204, %s201, 1
      %s206 = smul.addr %s203, 2
      %s207 = sadd.s32 %s205, %s206
      %s208 = smul.addr %s207, 8
      %s209 = scalar_lea.vmem %s0, %s208
      %s210 = smul.u32 2, %s19
      %s211 = smul.u32 2, %s20
      %p212 = scmp.lt.s32.totalorder %s18, 1
      %s213 = scalar_select %p212, %s18, 1
      %p214 = scmp.lt.s32.totalorder %s211, 1
      %s215 = scalar_select %p214, %s211, 1
      %s216 = smul.addr %s213, 2
      %s217 = sadd.s32 %s215, %s216
      %s218 = smul.addr %s217, 8
      %s219 = scalar_lea.vmem %s1, %s218
      %s220 = smul.u32 2, %s20
      %s221 = smul.u32 2, %s19
      %p222 = scmp.lt.s32.totalorder %s18, 1
      %s223 = scalar_select %p222, %s18, 1
      %p224 = scmp.lt.s32.totalorder %s221, 1
      %s225 = scalar_select %p224, %s221, 1
      %p226 = scmp.lt.s32.totalorder %s20, 0
      %s227 = scalar_select %p226, %s20, 0
      %s228 = sadd.s32 %s227, %s225
      %s229 = smul.addr %s223, 2
      %s230 = sadd.s32 %s228, %s229
      %s231 = smul.addr %s230, 8
      %s232 = scalar_lea.vmem %s2, %s231
      %s233 = smul.u32 2, %s19
      %v234 = vld [vmem:[%s209] sm:$0xff]
      %v235 = vld [vmem:[%s209 + $0x8] sm:$0xff]
      %v236 = vld [vmem:[%s219] sm:$0xff]
      %v237 = vld [vmem:[%s219 + $0x8] sm:$0xff]
      %v238 = vmul.f32 %v234, %v234
      %v239 = vmul.f32 %v235, %v235
      %240 = vadd.xlane.f32.xlu0 %v238
      %v241 = vpop.xlane.xlu0 %240
      %242 = vadd.xlane.f32.xlu0 %v239
      %v243 = vpop.xlane.xlu0 %242
      %v244 = vmul.f32 %v236, %v236
      %v245 = vmul.f32 %v237, %v237
      %246 = vadd.xlane.f32.xlu0 %v244
      %v247 = vpop.xlane.xlu0 %246
      %248 = vadd.xlane.f32.xlu0 %v245
      %v249 = vpop.xlane.xlu0 %248
      %250 = vmatprep.subr.mxu0 0.0
      %251 = vmatpush1.xpose.msra.mxu0 0.0
      %252 = vmatprep.subr.mxu0 0.0
      %253 = vmatpush1.xpose.msra.mxu0 0.0
      %254 = vmatprep.subr.mxu0 0.0
      %255 = vmatpush1.xpose.msra.mxu0 0.0
      %256 = vmatprep.subr.mxu0 0.0
      %257 = vmatpush1.xpose.msra.mxu0 0.0
      %258 = vmatprep.subr.mxu0 0.0
      %259 = vmatpush1.xpose.msra.mxu0 0.0
      %260 = vmatprep.subr.mxu0 0.0
      %261 = vmatpush1.xpose.msra.mxu0 0.0
      %262 = vmatprep.subr.mxu0 0.0
      %263 = vmatpush1.xpose.msra.mxu0 0.0
      %264 = vmatprep.subr.mxu0 0.0
      %265 = vmatpush1.xpose.msra.mxu0 0.0
      %266 = vmatprep.subr.mxu0 0.0
      %267 = vmatpush1.xpose.msra.mxu0 0.0
      %268 = vmatprep.subr.mxu0 0.0
      %269 = vmatpush1.xpose.msra.mxu0 0.0
      %270 = vmatprep.subr.mxu0 0.0
      %271 = vmatpush1.xpose.msra.mxu0 0.0
      %272 = vmatprep.subr.mxu0 0.0
      %273 = vmatpush1.xpose.msra.mxu0 0.0
      %274 = vmatprep.subr.mxu0 0.0
      %275 = vmatpush1.xpose.msra.mxu0 0.0
      %276 = vmatprep.subr.mxu0 0.0
      %277 = vmatpush1.xpose.msra.mxu0 0.0
      %278 = vmatprep.subr.mxu0 0.0
      %279 = vmatpush1.xpose.msra.mxu0 %v237
      %280 = vmatprep.subr.mxu0 0.0
      %281 = vmatpush1.xpose.msra.mxu0 %v236
      %282 = vmatprep.subr.mxu0 0.0
      %283 = vmatpush2.xpose.msra.mxu0 0.0
      %284 = vmatprep.subr.mxu0 0.0
      %285 = vmatpush2.xpose.msra.mxu0 0.0
      %286 = vmatprep.subr.mxu0 0.0
      %287 = vmatpush2.xpose.msra.mxu0 0.0
      %288 = vmatprep.subr.mxu0 0.0
      %289 = vmatpush2.xpose.msra.mxu0 0.0
      %290 = vmatprep.subr.mxu0 0.0
      %291 = vmatpush2.xpose.msra.mxu0 0.0
      %292 = vmatprep.subr.mxu0 0.0
      %293 = vmatpush2.xpose.msra.mxu0 0.0
      %294 = vmatprep.subr.mxu0 0.0
      %295 = vmatpush2.xpose.msra.mxu0 0.0
      %296 = vmatprep.subr.mxu0 0.0
      %297 = vmatpush2.xpose.msra.mxu0 0.0
      %298 = vmatprep.subr.mxu0 0.0
      %299 = vmatpush2.xpose.msra.mxu0 0.0
      %300 = vmatprep.subr.mxu0 0.0
      %301 = vmatpush2.xpose.msra.mxu0 0.0
      %302 = vmatprep.subr.mxu0 0.0
      %303 = vmatpush2.xpose.msra.mxu0 0.0
      %304 = vmatprep.subr.mxu0 0.0
      %305 = vmatpush2.xpose.msra.mxu0 0.0
      %306 = vmatprep.subr.mxu0 0.0
      %307 = vmatpush2.xpose.msra.mxu0 0.0
      %308 = vmatprep.subr.mxu0 0.0
      %309 = vmatpush2.xpose.msra.mxu0 0.0
      %310 = vmatprep.subr.mxu0 0.0
      %311 = vmatpush2.xpose.msra.mxu0 0.0
      %312 = vmatprep.subr.mxu0 0.0
      %313 = vmatpush2.xpose.msra.mxu0 0.0
      %314 = vmatprep.mubr.f32.mxu0 0.0
      %315 = vmatmul.mubr.f32.gmra.mxu0 %v234
      %v316 = vpop.f32.mrf.mxu0
      %v317 = vadd.f32 0.0, %v316
      %v318 = vpop.f32.mrf.mxu0
      %319 = vmatprep.mubr.f32.mxu0 0.0
      %320 = vmatmul.mubr.f32.gmra.mxu0 %v235
      %v321 = vpop.f32.mrf.mxu0
      %v322 = vadd.f32 0.0, %v321
      %v323 = vpop.f32.mrf.mxu0
      %324 = vdwg.mxu0
      %v325 = vmul.f32 %v317, 2.0
      %v326 = vmul.f32 %v322, 2.0
      %v327 = vsub.f32 %v241, %v325
      %v328 = vsub.f32 %v243, %v326
      %329 = vxpose.xlu0.b32.start [1/16] %v247, 128
      %330 = vxpose.xlu0.b32.cont [2/16] %v249, 128
      %331 = vxpose.xlu0.b32.cont [3/16] 0.0, 128
      %332 = vxpose.xlu0.b32.cont [4/16] 0.0, 128
      %333 = vxpose.xlu0.b32.cont [5/16] 0.0, 128
      %334 = vxpose.xlu0.b32.cont [6/16] 0.0, 128
      %335 = vxpose.xlu0.b32.cont [7/16] 0.0, 128
      %336 = vxpose.xlu0.b32.cont [8/16] 0.0, 128
      %337 = vxpose.xlu0.b32.cont [9/16] 0.0, 128
      %338 = vxpose.xlu0.b32.cont [10/16] 0.0, 128
      %339 = vxpose.xlu0.b32.cont [11/16] 0.0, 128
      %340 = vxpose.xlu0.b32.cont [12/16] 0.0, 128
      %341 = vxpose.xlu0.b32.cont [13/16] 0.0, 128
      %342 = vxpose.xlu0.b32.cont [14/16] 0.0, 128
      %343 = vxpose.xlu0.b32.cont [15/16] 0.0, 128
      %344 = vxpose.xlu0.b32.end [16/16] 0.0, 128
      %v345 = vpop.trf.xlu0
      %v346 = vpop.trf.xlu0
      %v347 = vpop.trf.xlu0
      %v348 = vpop.trf.xlu0
      %v349 = vpop.trf.xlu0
      %v350 = vpop.trf.xlu0
      %v351 = vpop.trf.xlu0
      %v352 = vpop.trf.xlu0
      %v353 = vpop.trf.xlu0
      %v354 = vpop.trf.xlu0
      %v355 = vpop.trf.xlu0
      %v356 = vpop.trf.xlu0
      %v357 = vpop.trf.xlu0
      %v358 = vpop.trf.xlu0
      %v359 = vpop.trf.xlu0
      %v360 = vpop.trf.xlu0
      %v361 = vlaneseq
      %v362 = vshrl.u32 %v361, 7
      %v363 = vsub.s32 0, %v362
      %v364 = vrot.slane %v345, %v363
      %v365 = vadd.f32 %v327, %v364
      %v366 = vadd.f32 %v328, %v364
      %vm367 = vcmask 130048
      %368 = vst.msk [vmem:[%s232] sm:$0xff] %vm367, %v365
      %369 = vst.msk [vmem:[%s232 + $0x8] sm:$0xff] %vm367, %v366
      %s370 = smul.u32 2, %s19
      %p371 = scmp.lt.s32.totalorder %s18, 1
      %s372 = scalar_select %p371, %s18, 1
      %p373 = scmp.lt.s32.totalorder %s370, 1
      %s374 = scalar_select %p373, %s370, 1
      %p375 = scmp.lt.s32.totalorder %s20, 0
      %s376 = scalar_select %p375, %s20, 0
      %s377 = sadd.s32 %s376, %s374
      %s378 = smul.addr %s372, 2
      %s379 = sadd.s32 %s377, %s378
      %s380 = smul.addr %s379, 8
      %s381 = scalar_lea.vmem %s2, %s380
      // Predicated region
      $region29: #{plain_dyn_block2d.3} parent=27 // pred_check
        %p382 = pneg %p110
      $region30: #{plain_dyn_block2d.3} parent=27 // pred_check_branch
        %384 = sbr.rel (%p382) target = $region32
      $region31: #{plain_dyn_block2d.3} parent=27 // pred_region
        %s385 = smul.u32 2, %s19
      $region32: #{plain_dyn_block2d.3} parent=27 // pred_fallthru
        _
    $region28: #{plain_dyn_block2d.3} parent=5 // pred_fallthru
      _
    %p386 = scmp.le.s32.totalorder 2, %s8
    // Predicated region
    $region33: #{plain_dyn_block2d.3} parent=5 // pred_check
      %p387 = pneg %p386
    $region34: #{plain_dyn_block2d.3} parent=5 // pred_check_branch
      %389 = sbr.rel (%p387) target = $region36
    $region35: #{plain_dyn_block2d.3} parent=5 // pred_region
      %s390 = ssub.s32 %s8, 2
      // Predicated region
      $region37: #{plain_dyn_block2d.3} parent=35 // pred_check
        %p391 = pneg %p116
      $region38: #{plain_dyn_block2d.3} parent=35 // pred_check_branch
        %393 = sbr.rel (%p391) target = $region40
      $region39: #{plain_dyn_block2d.3} parent=35 // pred_region
        %s394 = smul.u32 2, %s22
        %p395 = scmp.lt.s32.totalorder %s21, 1
        %s396 = scalar_select %p395, %s21, 1
        %p397 = scmp.lt.s32.totalorder %s394, 1
        %s398 = scalar_select %p397, %s394, 1
        %p399 = scmp.lt.s32.totalorder %s23, 0
        %s400 = scalar_select %p399, %s23, 0
        %s401 = sadd.s32 %s400, %s398
        %s402 = smul.addr %s396, 2
        %s403 = sadd.s32 %s401, %s402
        %s404 = smul.addr %s403, 8
        %s405 = scalar_lea.vmem %s2, %s404
      $region40: #{plain_dyn_block2d.3} parent=35 // pred_fallthru
        _
    $region36: #{plain_dyn_block2d.3} parent=5 // pred_fallthru
      _
  $region6: #{plain_dyn_block2d.3} parent=0 // loop_footer
    %s12 = sadd.s32 1, %s8
  $region7: #{plain_dyn_block2d.3} parent=0 // loop_footer_branch
    %7 = sbr.rel target = $region3
  $region8: #{plain_dyn_block2d.3} parent=0 // loop_exit
    _

// kernel: plain_dyn_block2d.4
$region0: #{plain_dyn_block2d.4}
  #allocation0 [shape = 'u32[]', space=smem, size = 0x4, offset = 0x4, fixed_abs, tag = 'smem constant byte address 0x4 - core index']
  #allocation1 [shape = 'u32[144,128]{1,0:T(1,128)}', space=vmem, size = 0x12000, scoped, tag = 'internal scratch']
  %s0 = inlined_call_operand.vmem [shape: f32[2,16,128], index: 0, kind: input, shape index: {}]
  %s1 = inlined_call_operand.vmem [shape: f32[128,256], index: 1, kind: input, shape index: {}]
  %s2 = inlined_call_operand.vmem [shape: f32[1,256], index: 2, kind: input, shape index: {}]
  %s3 = inlined_call_operand.vmem [shape: f32[2,16,128], index: 3, kind: output, shape index: {0}]
  %s4 = inlined_call_operand.vmem [shape: f32[2,16,128], index: 4, kind: output, shape index: {1}]
  %5 = xla_tuple %s3, %s4
  %s6 = sld [smem:[#allocation0]]
  $region53: #{plain_dyn_block2d.4} parent=0
    _
  %s8 = ssub.s32 1, %s6
  %s9 = scalar_select 0, %s8, %s6
  loop: start=0, step=1, limit=4
  $region2: #{plain_dyn_block2d.4} parent=0 // loop_pre_header
    _
  $region3: #{plain_dyn_block2d.4} parent=0 // loop_header
    %s11 = sphi 0, %s15
    %p12 = scmp.ge.s32.totalorder %s11, 4
    %s18 = sphi 0, %s30
    %s19 = sphi 0, %s26
    %s20 = sphi 0, %s18
    %s21 = sphi 0, %s19
    %s22 = sphi 0, %s20
    %s23 = sphi 0, %s21
    %s35 = sphi 0, %s37
    %s38 = sphi 0, %s35
    %s39 = sphi 0, %s38
    %s55 = sphi 0, %s39
    %s59 = sphi 0, %s59
    %s61 = sphi 0, %s59
    %s62 = sphi 0, %s61
    %s76 = sphi 0, %s62
    %s80 = sphi 0, %s80
    %s82 = sphi 0, %s80
    %s83 = sphi 0, %s82
    %s97 = sphi 0, %s83
    %s105 = sphi 0, %s107
    %s108 = sphi 0, %s105
    %s109 = sphi 0, %s108
    %s125 = sphi 0, %s109
    %s133 = sphi 0, %s135
    %s136 = sphi 0, %s133
    %s137 = sphi 0, %s136
    %s153 = sphi 0, %s137
  $region4: #{plain_dyn_block2d.4} parent=0 // loop_header_branch
    %14 = sbr.rel (%p12) target = $region8
  $region5: #{plain_dyn_block2d.4} parent=0 // loop_body
    %s16 = ssub.s32 %s11, 1
    %s17 = ssub.s32 %s11, 2
    %s24 = sadd.s32 1, %s19
    %p25 = scmp.ge.s32.totalorder %s24, 1
    %s26 = scalar_select %p25, 0, %s24
    %s27 = sadd.s32 1, %s18
    %s28 = scalar_select %p25, %s27, %s18
    %p29 = scmp.ge.s32.totalorder %s28, 2
    %s30 = scalar_select %p29, 0, %s28
    %s31 = ssub.s32 %s18, %s30
    %s32 = ssub.s32 %s19, %s26
    %s33 = sor.u32 %s31, %s32
    %p34 = scmp.eq.s32.totalorder %s33, 0
    %s36 = sadd.s32 %s35, 1
    %s37 = scalar_select %p34, %s35, %s36
    %p40 = pneg %p34
    %p41 = scmp.eq.s32.totalorder %s11, 1
    %p42 = por %p40, %p41
    %p43 = scmp.ne.s32.totalorder %s35, %s38
    %p44 = scmp.eq.s32.totalorder %s11, 0
    %p45 = por %p43, %p44
    %p46 = scmp.ne.s32.totalorder %s35, %s38
    %p47 = scmp.eq.s32.totalorder %s16, 1
    %p48 = por %p46, %p47
    %p49 = scmp.ne.s32.totalorder %s38, %s39
    %p50 = scmp.eq.s32.totalorder %s16, 0
    %p51 = por %p49, %p50
    %p52 = scmp.ne.s32.totalorder %s38, %s39
    %p53 = scmp.eq.s32.totalorder %s17, 1
    %p54 = por %p52, %p53
    %p56 = scmp.ne.s32.totalorder %s39, %s55
    %p57 = scmp.eq.s32.totalorder %s17, 0
    %p58 = por %p56, %p57
    %s60 = sadd.s32 %s59, 1
    %p63 = scmp.eq.s32.totalorder %s11, 1
    %p64 = scmp.ne.s32.totalorder %s59, %s61
    %p65 = scmp.eq.s32.totalorder %s11, 0
    %p66 = por %p64, %p65
    %p67 = scmp.ne.s32.totalorder %s59, %s61
    %p68 = scmp.eq.s32.totalorder %s16, 1
    %p69 = por %p67, %p68
    %p70 = scmp.ne.s32.totalorder %s61, %s62
    %p71 = scmp.eq.s32.totalorder %s16, 0
    %p72 = por %p70, %p71
    %p73 = scmp.ne.s32.totalorder %s61, %s62
    %p74 = scmp.eq.s32.totalorder %s17, 1
    %p75 = por %p73, %p74
    %p77 = scmp.ne.s32.totalorder %s62, %s76
    %p78 = scmp.eq.s32.totalorder %s17, 0
    %p79 = por %p77, %p78
    %s81 = sadd.s32 %s80, 1
    %p84 = scmp.eq.s32.totalorder %s11, 1
    %p85 = scmp.ne.s32.totalorder %s80, %s82
    %p86 = scmp.eq.s32.totalorder %s11, 0
    %p87 = por %p85, %p86
    %p88 = scmp.ne.s32.totalorder %s80, %s82
    %p89 = scmp.eq.s32.totalorder %s16, 1
    %p90 = por %p88, %p89
    %p91 = scmp.ne.s32.totalorder %s82, %s83
    %p92 = scmp.eq.s32.totalorder %s16, 0
    %p93 = por %p91, %p92
    %p94 = scmp.ne.s32.totalorder %s82, %s83
    %p95 = scmp.eq.s32.totalorder %s17, 1
    %p96 = por %p94, %p95
    %p98 = scmp.ne.s32.totalorder %s83, %s97
    %p99 = scmp.eq.s32.totalorder %s17, 0
    %p100 = por %p98, %p99
    %s101 = ssub.s32 %s18, %s30
    %s102 = ssub.s32 %s19, %s26
    %s103 = sor.u32 %s101, %s102
    %p104 = scmp.eq.s32.totalorder %s103, 0
    %s106 = sadd.s32 %s105, 1
    %s107 = scalar_select %p104, %s105, %s106
    %p110 = pneg %p104
    %p111 = scmp.eq.s32.totalorder %s11, 1
    %p112 = por %p110, %p111
    %p113 = scmp.ne.s32.totalorder %s105, %s108
    %p114 = scmp.eq.s32.totalorder %s11, 0
    %p115 = por %p113, %p114
    %p116 = scmp.ne.s32.totalorder %s105, %s108
    %p117 = scmp.eq.s32.totalorder %s16, 1
    %p118 = por %p116, %p117
    %p119 = scmp.ne.s32.totalorder %s108, %s109
    %p120 = scmp.eq.s32.totalorder %s16, 0
    %p121 = por %p119, %p120
    %p122 = scmp.ne.s32.totalorder %s108, %s109
    %p123 = scmp.eq.s32.totalorder %s17, 1
    %p124 = por %p122, %p123
    %p126 = scmp.ne.s32.totalorder %s109, %s125
    %p127 = scmp.eq.s32.totalorder %s17, 0
    %p128 = por %p126, %p127
    %s129 = ssub.s32 %s18, %s30
    %s130 = ssub.s32 %s19, %s26
    %s131 = sor.u32 %s129, %s130
    %p132 = scmp.eq.s32.totalorder %s131, 0
    %s134 = sadd.s32 %s133, 1
    %s135 = scalar_select %p132, %s133, %s134
    %p138 = pneg %p132
    %p139 = scmp.eq.s32.totalorder %s11, 1
    %p140 = por %p138, %p139
    %p141 = scmp.ne.s32.totalorder %s133, %s136
    %p142 = scmp.eq.s32.totalorder %s11, 0
    %p143 = por %p141, %p142
    %p144 = scmp.ne.s32.totalorder %s133, %s136
    %p145 = scmp.eq.s32.totalorder %s16, 1
    %p146 = por %p144, %p145
    %p147 = scmp.ne.s32.totalorder %s136, %s137
    %p148 = scmp.eq.s32.totalorder %s16, 0
    %p149 = por %p147, %p148
    %p150 = scmp.ne.s32.totalorder %s136, %s137
    %p151 = scmp.eq.s32.totalorder %s17, 1
    %p152 = por %p150, %p151
    %p154 = scmp.ne.s32.totalorder %s137, %s153
    %p155 = scmp.eq.s32.totalorder %s17, 0
    %p156 = por %p154, %p155
    %p157 = scmp.le.s32.totalorder 1, %s11
    %p158 = scmp.lt.s32.totalorder %s11, 3
    %p159 = pnand %p157, %p158
    %p160 = pneg %p159
    // Predicated region
    $region9: #{plain_dyn_block2d.4} parent=5 // pred_check
      _
    $region10: #{plain_dyn_block2d.4} parent=5 // pred_check_branch
      %162 = sbr.rel (%p159) target = $region12
    $region11: #{plain_dyn_block2d.4} parent=5 // pred_region
      %s163 = ssub.s32 %s11, 1
      // Predicated region
      $region13: #{plain_dyn_block2d.4} parent=11 // pred_check
        %p164 = pneg %p72
      $region14: #{plain_dyn_block2d.4} parent=11 // pred_check_branch
        %166 = sbr.rel (%p164) target = $region16
      $region15: #{plain_dyn_block2d.4} parent=11 // pred_region
        _
      $region16: #{plain_dyn_block2d.4} parent=11 // pred_fallthru
        _
      // Predicated region
      $region17: #{plain_dyn_block2d.4} parent=11 // pred_check
        %p167 = pneg %p93
      $region18: #{plain_dyn_block2d.4} parent=11 // pred_check_branch
        %169 = sbr.rel (%p167) target = $region20
      $region19: #{plain_dyn_block2d.4} parent=11 // pred_region
        _
      $region20: #{plain_dyn_block2d.4} parent=11 // pred_fallthru
        _
    $region12: #{plain_dyn_block2d.4} parent=5 // pred_fallthru
      _
    %p170 = scmp.lt.s32.totalorder %s11, 2
    // Predicated region
    $region21: #{plain_dyn_block2d.4} parent=5 // pred_check
      %p171 = pneg %p170
    $region22: #{plain_dyn_block2d.4} parent=5 // pred_check_branch
      %173 = sbr.rel (%p171) target = $region24
    $region23: #{plain_dyn_block2d.4} parent=5 // pred_region
      // Predicated region
      $region25: #{plain_dyn_block2d.4} parent=23 // pred_check
        %p174 = pneg %p45
      $region26: #{plain_dyn_block2d.4} parent=23 // pred_check_branch
        %176 = sbr.rel (%p174) target = $region28
      $region27: #{plain_dyn_block2d.4} parent=23 // pred_region
        %s177 = smul.u32 2, %s19
        %p178 = scmp.lt.s32.totalorder %s18, 1
        %s179 = scalar_select %p178, %s18, 1
        %p180 = scmp.lt.s32.totalorder %s177, 1
        %s181 = scalar_select %p180, %s177, 1
        %s182 = smul.addr %s179, 2
        %s183 = sadd.s32 %s181, %s182
        %s184 = smul.addr %s183, 8
        %s185 = scalar_lea.vmem %s0, %s184
        %s186 = smul.u32 2, %s19
      $region28: #{plain_dyn_block2d.4} parent=23 // pred_fallthru
        _
    $region24: #{plain_dyn_block2d.4} parent=5 // pred_fallthru
      _
    %p187 = scmp.le.s32.totalorder 1, %s11
    %p188 = scmp.lt.s32.totalorder %s11, 3
    %p189 = pnand %p187, %p188
    %p190 = pneg %p189
    // Predicated region
    $region29: #{plain_dyn_block2d.4} parent=5 // pred_check
      _
    $region30: #{plain_dyn_block2d.4} parent=5 // pred_check_branch
      %192 = sbr.rel (%p189) target = $region32
    $region31: #{plain_dyn_block2d.4} parent=5 // pred_region
      %s193 = ssub.s32 %s11, 1
      %s194 = smul.u32 2, %s21
      %p195 = scmp.lt.s32.totalorder %s20, 1
      %s196 = scalar_select %p195, %s20, 1
      %p197 = scmp.lt.s32.totalorder %s194, 1
      %s198 = scalar_select %p197, %s194, 1
      %s199 = smul.addr %s196, 2
      %s200 = sadd.s32 %s198, %s199
      %s201 = smul.addr %s200, 8
      %s202 = scalar_lea.vmem %s0, %s201
      %p203 = pneg %p51
      %p204 = pneg %p48
      %p205 = pneg %p72
      %p206 = pneg %p69
      %p207 = pneg %p93
      %p208 = pneg %p90
      %p209 = pneg %p121
      %p210 = pneg %p118
      %s211 = smul.u32 2, %s21
      %p212 = scmp.lt.s32.totalorder %s20, 1
      %s213 = scalar_select %p212, %s20, 1
      %p214 = scmp.lt.s32.totalorder %s211, 1
      %s215 = scalar_select %p214, %s211, 1
      %s216 = smul.addr %s213, 2
      %s217 = sadd.s32 %s215, %s216
      %s218 = smul.addr %s217, 8
      %s219 = scalar_lea.vmem %s3, %s218
      %p220 = pneg %p149
      %p221 = pneg %p146
      %s222 = smul.u32 2, %s21
      %p223 = scmp.lt.s32.totalorder %s20, 1
      %s224 = scalar_select %p223, %s20, 1
      %p225 = scmp.lt.s32.totalorder %s222, 1
      %s226 = scalar_select %p225, %s222, 1
      %s227 = smul.addr %s224, 2
      %s228 = sadd.s32 %s226, %s227
      %s229 = smul.addr %s228, 8
      %s230 = scalar_lea.vmem %s4, %s229
      %s231 = smul.u32 2, %s21
      %p232 = scmp.lt.s32.totalorder %s20, 1
      %s233 = scalar_select %p232, %s20, 1
      %p234 = scmp.lt.s32.totalorder %s231, 1
      %s235 = scalar_select %p234, %s231, 1
      %s236 = smul.addr %s233, 2
      %s237 = sadd.s32 %s235, %s236
      %s238 = smul.addr %s237, 8
      %s239 = scalar_lea.vmem %s0, %s238
      %s240 = smul.u32 2, %s21
      %s241 = smul.u32 2, %s21
      %p242 = scmp.lt.s32.totalorder %s20, 1
      %s243 = scalar_select %p242, %s20, 1
      %p244 = scmp.lt.s32.totalorder %s241, 1
      %s245 = scalar_select %p244, %s241, 1
      %s246 = smul.addr %s243, 2
      %s247 = sadd.s32 %s245, %s246
      %s248 = smul.addr %s247, 8
      %s249 = scalar_lea.vmem %s3, %s248
      %s250 = smul.u32 2, %s21
      %s251 = smul.u32 2, %s21
      %p252 = scmp.lt.s32.totalorder %s20, 1
      %s253 = scalar_select %p252, %s20, 1
      %p254 = scmp.lt.s32.totalorder %s251, 1
      %s255 = scalar_select %p254, %s251, 1
      %s256 = smul.addr %s253, 2
      %s257 = sadd.s32 %s255, %s256
      %s258 = smul.addr %s257, 8
      %s259 = scalar_lea.vmem %s4, %s258
      %s260 = smul.u32 2, %s21
      %v261 = vld [vmem:[%s239] sm:$0xff]
      %v262 = vld [vmem:[%s239 + $0x8] sm:$0xff]
      %v263 = vld [vmem:[%s1] sm:$0xff]
      %v264 = vld [vmem:[%s1 + $0x8] sm:$0xff]
      %v265 = vld [vmem:[%s1 + $0x10] sm:$0xff]
      %v266 = vld [vmem:[%s1 + $0x18] sm:$0xff]
      %v267 = vld [vmem:[%s1 + $0x20] sm:$0xff]
      %v268 = vld [vmem:[%s1 + $0x28] sm:$0xff]
      %v269 = vld [vmem:[%s1 + $0x30] sm:$0xff]
      %v270 = vld [vmem:[%s1 + $0x38] sm:$0xff]
      %v271 = vld [vmem:[%s1 + $0x40] sm:$0xff]
      %v272 = vld [vmem:[%s1 + $0x48] sm:$0xff]
      %v273 = vld [vmem:[%s1 + $0x50] sm:$0xff]
      %v274 = vld [vmem:[%s1 + $0x58] sm:$0xff]
      %v275 = vld [vmem:[%s1 + $0x60] sm:$0xff]
      %v276 = vld [vmem:[%s1 + $0x68] sm:$0xff]
      %v277 = vld [vmem:[%s1 + $0x70] sm:$0xff]
      %v278 = vld [vmem:[%s1 + $0x78] sm:$0xff]
      %v279 = vld [vmem:[%s1 + $0x80] sm:$0xff]
      %v280 = vld [vmem:[%s1 + $0x88] sm:$0xff]
      %v281 = vld [vmem:[%s1 + $0x90] sm:$0xff]
      %v282 = vld [vmem:[%s1 + $0x98] sm:$0xff]
      %v283 = vld [vmem:[%s1 + $0xa0] sm:$0xff]
      %v284 = vld [vmem:[%s1 + $0xa8] sm:$0xff]
      %v285 = vld [vmem:[%s1 + $0xb0] sm:$0xff]
      %v286 = vld [vmem:[%s1 + $0xb8] sm:$0xff]
      %v287 = vld [vmem:[%s1 + $0xc0] sm:$0xff]
      %v288 = vld [vmem:[%s1 + $0xc8] sm:$0xff]
      %v289 = vld [vmem:[%s1 + $0xd0] sm:$0xff]
      %v290 = vld [vmem:[%s1 + $0xd8] sm:$0xff]
      %v291 = vld [vmem:[%s1 + $0xe0] sm:$0xff]
      %v292 = vld [vmem:[%s1 + $0xe8] sm:$0xff]
      %v293 = vld [vmem:[%s1 + $0xf0] sm:$0xff]
      %v294 = vld [vmem:[%s1 + $0xf8] sm:$0xff]
      %v295 = vld [vmem:[%s2] sm:$0x3]
      %v297 = vlaneseq
      %v298 = vshrl.u32 %v297, 7
      %v299 = vsub.s32 0, %v298
      %v300 = vrot.slane %v295, %v299
      %v301 = vlaneseq
      %v302 = vshrl.u32 %v301, 7
      %v303 = vsub.s32 1, %v302
      %v304 = vrot.slane %v295, %v303
      %307 = vmatprep.subr.mxu0 %v294
      %308 = vmatpush1.msra.mxu0 %v293
      %309 = vmatprep.subr.mxu0 %v292
      %310 = vmatpush1.msra.mxu0 %v291
      %311 = vmatprep.subr.mxu0 %v290
      %312 = vmatpush1.msra.mxu0 %v289
      %313 = vmatprep.subr.mxu0 %v288
      %314 = vmatpush1.msra.mxu0 %v287
      %315 = vmatprep.subr.mxu0 %v286
      %316 = vmatpush1.msra.mxu0 %v285
      %317 = vmatprep.subr.mxu0 %v284
      %318 = vmatpush1.msra.mxu0 %v283
      %319 = vmatprep.subr.mxu0 %v282
      %320 = vmatpush1.msra.mxu0 %v281
      %321 = vmatprep.subr.mxu0 %v280
      %322 = vmatpush1.msra.mxu0 %v279
      %323 = vmatprep.subr.mxu0 %v278
      %324 = vmatpush1.msra.mxu0 %v277
      %325 = vmatprep.subr.mxu0 %v276
      %326 = vmatpush1.msra.mxu0 %v275
      %327 = vmatprep.subr.mxu0 %v274
      %328 = vmatpush1.msra.mxu0 %v273
      %329 = vmatprep.subr.mxu0 %v272
      %330 = vmatpush1.msra.mxu0 %v271
      %331 = vmatprep.subr.mxu0 %v270
      %332 = vmatpush1.msra.mxu0 %v269
      %333 = vmatprep.subr.mxu0 %v268
      %334 = vmatpush1.msra.mxu0 %v267
      %335 = vmatprep.subr.mxu0 %v266
      %336 = vmatpush1.msra.mxu0 %v265
      %337 = vmatprep.subr.mxu0 %v264
      %338 = vmatpush1.msra.mxu0 %v263
      %339 = vmatprep.subr.mxu0 0.0
      %340 = vmatpush2.msra.mxu0 0.0
      %341 = vmatprep.subr.mxu0 0.0
      %342 = vmatpush2.msra.mxu0 0.0
      %343 = vmatprep.subr.mxu0 0.0
      %344 = vmatpush2.msra.mxu0 0.0
      %345 = vmatprep.subr.mxu0 0.0
      %346 = vmatpush2.msra.mxu0 0.0
      %347 = vmatprep.subr.mxu0 0.0
      %348 = vmatpush2.msra.mxu0 0.0
      %349 = vmatprep.subr.mxu0 0.0
      %350 = vmatpush2.msra.mxu0 0.0
      %351 = vmatprep.subr.mxu0 0.0
      %352 = vmatpush2.msra.mxu0 0.0
      %353 = vmatprep.subr.mxu0 0.0
      %354 = vmatpush2.msra.mxu0 0.0
      %355 = vmatprep.subr.mxu0 0.0
      %356 = vmatpush2.msra.mxu0 0.0
      %357 = vmatprep.subr.mxu0 0.0
      %358 = vmatpush2.msra.mxu0 0.0
      %359 = vmatprep.subr.mxu0 0.0
      %360 = vmatpush2.msra.mxu0 0.0
      %361 = vmatprep.subr.mxu0 0.0
      %362 = vmatpush2.msra.mxu0 0.0
      %363 = vmatprep.subr.mxu0 0.0
      %364 = vmatpush2.msra.mxu0 0.0
      %365 = vmatprep.subr.mxu0 0.0
      %366 = vmatpush2.msra.mxu0 0.0
      %367 = vmatprep.subr.mxu0 0.0
      %368 = vmatpush2.msra.mxu0 0.0
      %369 = vmatprep.subr.mxu0 0.0
      %370 = vmatpush2.msra.mxu0 0.0
      %371 = vmatprep.mubr.f32.mxu0 0.0
      %372 = vmatmul.mubr.f32.gmra.mxu0 %v261
      %v373 = vpop.f32.mrf.mxu0
      %v374 = vadd.f32 %v300, %v373
      %v375 = vpop.f32.mrf.mxu0
      %v376 = vadd.f32 %v304, %v375
      %377 = vmatprep.mubr.f32.mxu0 0.0
      %378 = vmatmul.mubr.f32.gmra.mxu0 %v262
      %v379 = vpop.f32.mrf.mxu0
      %v380 = vadd.f32 %v300, %v379
      %v381 = vpop.f32.mrf.mxu0
      %v382 = vadd.f32 %v304, %v381
      %383 = vdwg.mxu0
      %384 = vst [vmem:[%s249] sm:$0xff] %v374
      %385 = vst [vmem:[%s249 + $0x8] sm:$0xff] %v380
      %386 = vst [vmem:[%s259] sm:$0xff] %v376
      %387 = vst [vmem:[%s259 + $0x8] sm:$0xff] %v382
      %s388 = smul.u32 2, %s21
      %p389 = scmp.lt.s32.totalorder %s20, 1
      %s390 = scalar_select %p389, %s20, 1
      %p391 = scmp.lt.s32.totalorder %s388, 1
      %s392 = scalar_select %p391, %s388, 1
      %s393 = smul.addr %s390, 2
      %s394 = sadd.s32 %s392, %s393
      %s395 = smul.addr %s394, 8
      %s396 = scalar_lea.vmem %s3, %s395
      %s397 = smul.u32 2, %s21
      %p398 = scmp.lt.s32.totalorder %s20, 1
      %s399 = scalar_select %p398, %s20, 1
      %p400 = scmp.lt.s32.totalorder %s397, 1
      %s401 = scalar_select %p400, %s397, 1
      %s402 = smul.addr %s399, 2
      %s403 = sadd.s32 %s401, %s402
      %s404 = smul.addr %s403, 8
      %s405 = scalar_lea.vmem %s4, %s404
      // Predicated region
      $region33: #{plain_dyn_block2d.4} parent=31 // pred_check
        %p406 = pneg %p118
      $region34: #{plain_dyn_block2d.4} parent=31 // pred_check_branch
        %408 = sbr.rel (%p406) target = $region36
      $region35: #{plain_dyn_block2d.4} parent=31 // pred_region
        %s409 = smul.u32 2, %s21
      $region36: #{plain_dyn_block2d.4} parent=31 // pred_fallthru
        _
      // Predicated region
      $region37: #{plain_dyn_block2d.4} parent=31 // pred_check
        %p410 = pneg %p146
      $region38: #{plain_dyn_block2d.4} parent=31 // pred_check_branch
        %412 = sbr.rel (%p410) target = $region40
      $region39: #{plain_dyn_block2d.4} parent=31 // pred_region
        %s413 = smul.u32 2, %s21
      $region40: #{plain_dyn_block2d.4} parent=31 // pred_fallthru
        _
    $region32: #{plain_dyn_block2d.4} parent=5 // pred_fallthru
      _
    %p414 = scmp.le.s32.totalorder 2, %s11
    // Predicated region
    $region41: #{plain_dyn_block2d.4} parent=5 // pred_check
      %p415 = pneg %p414
    $region42: #{plain_dyn_block2d.4} parent=5 // pred_check_branch
      %417 = sbr.rel (%p415) target = $region44
    $region43: #{plain_dyn_block2d.4} parent=5 // pred_region
      %s418 = ssub.s32 %s11, 2
      // Predicated region
      $region45: #{plain_dyn_block2d.4} parent=43 // pred_check
        %p419 = pneg %p124
      $region46: #{plain_dyn_block2d.4} parent=43 // pred_check_branch
        %421 = sbr.rel (%p419) target = $region48
      $region47: #{plain_dyn_block2d.4} parent=43 // pred_region
        %s422 = smul.u32 2, %s23
        %p423 = scmp.lt.s32.totalorder %s22, 1
        %s424 = scalar_select %p423, %s22, 1
        %p425 = scmp.lt.s32.totalorder %s422, 1
        %s426 = scalar_select %p425, %s422, 1
        %s427 = smul.addr %s424, 2
        %s428 = sadd.s32 %s426, %s427
        %s429 = smul.addr %s428, 8
        %s430 = scalar_lea.vmem %s3, %s429
      $region48: #{plain_dyn_block2d.4} parent=43 // pred_fallthru
        _
      // Predicated region
      $region49: #{plain_dyn_block2d.4} parent=43 // pred_check
        %p431 = pneg %p152
      $region50: #{plain_dyn_block2d.4} parent=43 // pred_check_branch
        %433 = sbr.rel (%p431) target = $region52
      $region51: #{plain_dyn_block2d.4} parent=43 // pred_region
        %s434 = smul.u32 2, %s23
        %p435 = scmp.lt.s32.totalorder %s22, 1
        %s436 = scalar_select %p435, %s22, 1
        %p437 = scmp.lt.s32.totalorder %s434, 1
        %s438 = scalar_select %p437, %s434, 1
        %s439 = smul.addr %s436, 2
        %s440 = sadd.s32 %s438, %s439
        %s441 = smul.addr %s440, 8
        %s442 = scalar_lea.vmem %s4, %s441
      $region52: #{plain_dyn_block2d.4} parent=43 // pred_fallthru
        _
    $region44: #{plain_dyn_block2d.4} parent=5 // pred_fallthru
      _
  $region6: #{plain_dyn_block2d.4} parent=0 // loop_footer
    %s15 = sadd.s32 1, %s11
  $region7: #{plain_dyn_block2d.4} parent=0 // loop_footer_branch
    %10 = sbr.rel target = $region3
  $region8: #{plain_dyn_block2d.4} parent=0 // loop_exit
    _

// kernel: plain_dyn_block2d.5
$region0: #{plain_dyn_block2d.5}
  #allocation0 [shape = 'u32[]', space=smem, size = 0x4, offset = 0x4, fixed_abs, tag = 'smem constant byte address 0x4 - core index']
  #allocation1 [shape = 'u32[144,128]{1,0:T(1,128)}', space=vmem, size = 0x12000, scoped, tag = 'internal scratch']
  %s0 = inlined_call_operand.vmem [shape: f32[2,16,128], index: 0, kind: input, shape index: {}]
  %s1 = inlined_call_operand.vmem [shape: f32[2,16,128], index: 1, kind: input, shape index: {}]
  %s2 = inlined_call_operand.vmem [shape: f32[2,16,128], index: 2, kind: input, shape index: {}]
  %s3 = inlined_call_operand.vmem [shape: f32[2,16,128], index: 3, kind: output, shape index: {}]
  %s4 = sld [smem:[#allocation0]]
  $region45: #{plain_dyn_block2d.5} parent=0
    _
  %s6 = ssub.s32 1, %s4
  %s7 = scalar_select 0, %s6, %s4
  loop: start=0, step=1, limit=4
  $region2: #{plain_dyn_block2d.5} parent=0 // loop_pre_header
    _
  $region3: #{plain_dyn_block2d.5} parent=0 // loop_header
    %s9 = sphi 0, %s13
    %p10 = scmp.ge.s32.totalorder %s9, 4
    %s16 = sphi 0, %s28
    %s17 = sphi 0, %s24
    %s18 = sphi 0, %s16
    %s19 = sphi 0, %s17
    %s20 = sphi 0, %s18
    %s21 = sphi 0, %s19
    %s33 = sphi 0, %s35
    %s36 = sphi 0, %s33
    %s37 = sphi 0, %s36
    %s53 = sphi 0, %s37
    %s61 = sphi 0, %s63
    %s64 = sphi 0, %s61
    %s65 = sphi 0, %s64
    %s81 = sphi 0, %s65
    %s89 = sphi 0, %s91
    %s92 = sphi 0, %s89
    %s93 = sphi 0, %s92
    %s109 = sphi 0, %s93
    %s117 = sphi 0, %s119
    %s120 = sphi 0, %s117
    %s121 = sphi 0, %s120
    %s137 = sphi 0, %s121
  $region4: #{plain_dyn_block2d.5} parent=0 // loop_header_branch
    %12 = sbr.rel (%p10) target = $region8
  $region5: #{plain_dyn_block2d.5} parent=0 // loop_body
    %s14 = ssub.s32 %s9, 1
    %s15 = ssub.s32 %s9, 2
    %s22 = sadd.s32 1, %s17
    %p23 = scmp.ge.s32.totalorder %s22, 1
    %s24 = scalar_select %p23, 0, %s22
    %s25 = sadd.s32 1, %s16
    %s26 = scalar_select %p23, %s25, %s16
    %p27 = scmp.ge.s32.totalorder %s26, 2
    %s28 = scalar_select %p27, 0, %s26
    %s29 = ssub.s32 %s16, %s28
    %s30 = ssub.s32 %s17, %s24
    %s31 = sor.u32 %s29, %s30
    %p32 = scmp.eq.s32.totalorder %s31, 0
    %s34 = sadd.s32 %s33, 1
    %s35 = scalar_select %p32, %s33, %s34
    %p38 = pneg %p32
    %p39 = scmp.eq.s32.totalorder %s9, 1
    %p40 = por %p38, %p39
    %p41 = scmp.ne.s32.totalorder %s33, %s36
    %p42 = scmp.eq.s32.totalorder %s9, 0
    %p43 = por %p41, %p42
    %p44 = scmp.ne.s32.totalorder %s33, %s36
    %p45 = scmp.eq.s32.totalorder %s14, 1
    %p46 = por %p44, %p45
    %p47 = scmp.ne.s32.totalorder %s36, %s37
    %p48 = scmp.eq.s32.totalorder %s14, 0
    %p49 = por %p47, %p48
    %p50 = scmp.ne.s32.totalorder %s36, %s37
    %p51 = scmp.eq.s32.totalorder %s15, 1
    %p52 = por %p50, %p51
    %p54 = scmp.ne.s32.totalorder %s37, %s53
    %p55 = scmp.eq.s32.totalorder %s15, 0
    %p56 = por %p54, %p55
    %s57 = ssub.s32 %s16, %s28
    %s58 = ssub.s32 %s17, %s24
    %s59 = sor.u32 %s57, %s58
    %p60 = scmp.eq.s32.totalorder %s59, 0
    %s62 = sadd.s32 %s61, 1
    %s63 = scalar_select %p60, %s61, %s62
    %p66 = pneg %p60
    %p67 = scmp.eq.s32.totalorder %s9, 1
    %p68 = por %p66, %p67
    %p69 = scmp.ne.s32.totalorder %s61, %s64
    %p70 = scmp.eq.s32.totalorder %s9, 0
    %p71 = por %p69, %p70
    %p72 = scmp.ne.s32.totalorder %s61, %s64
    %p73 = scmp.eq.s32.totalorder %s14, 1
    %p74 = por %p72, %p73
    %p75 = scmp.ne.s32.totalorder %s64, %s65
    %p76 = scmp.eq.s32.totalorder %s14, 0
    %p77 = por %p75, %p76
    %p78 = scmp.ne.s32.totalorder %s64, %s65
    %p79 = scmp.eq.s32.totalorder %s15, 1
    %p80 = por %p78, %p79
    %p82 = scmp.ne.s32.totalorder %s65, %s81
    %p83 = scmp.eq.s32.totalorder %s15, 0
    %p84 = por %p82, %p83
    %s85 = ssub.s32 %s16, %s28
    %s86 = ssub.s32 %s17, %s24
    %s87 = sor.u32 %s85, %s86
    %p88 = scmp.eq.s32.totalorder %s87, 0
    %s90 = sadd.s32 %s89, 1
    %s91 = scalar_select %p88, %s89, %s90
    %p94 = pneg %p88
    %p95 = scmp.eq.s32.totalorder %s9, 1
    %p96 = por %p94, %p95
    %p97 = scmp.ne.s32.totalorder %s89, %s92
    %p98 = scmp.eq.s32.totalorder %s9, 0
    %p99 = por %p97, %p98
    %p100 = scmp.ne.s32.totalorder %s89, %s92
    %p101 = scmp.eq.s32.totalorder %s14, 1
    %p102 = por %p100, %p101
    %p103 = scmp.ne.s32.totalorder %s92, %s93
    %p104 = scmp.eq.s32.totalorder %s14, 0
    %p105 = por %p103, %p104
    %p106 = scmp.ne.s32.totalorder %s92, %s93
    %p107 = scmp.eq.s32.totalorder %s15, 1
    %p108 = por %p106, %p107
    %p110 = scmp.ne.s32.totalorder %s93, %s109
    %p111 = scmp.eq.s32.totalorder %s15, 0
    %p112 = por %p110, %p111
    %s113 = ssub.s32 %s16, %s28
    %s114 = ssub.s32 %s17, %s24
    %s115 = sor.u32 %s113, %s114
    %p116 = scmp.eq.s32.totalorder %s115, 0
    %s118 = sadd.s32 %s117, 1
    %s119 = scalar_select %p116, %s117, %s118
    %p122 = pneg %p116
    %p123 = scmp.eq.s32.totalorder %s9, 1
    %p124 = por %p122, %p123
    %p125 = scmp.ne.s32.totalorder %s117, %s120
    %p126 = scmp.eq.s32.totalorder %s9, 0
    %p127 = por %p125, %p126
    %p128 = scmp.ne.s32.totalorder %s117, %s120
    %p129 = scmp.eq.s32.totalorder %s14, 1
    %p130 = por %p128, %p129
    %p131 = scmp.ne.s32.totalorder %s120, %s121
    %p132 = scmp.eq.s32.totalorder %s14, 0
    %p133 = por %p131, %p132
    %p134 = scmp.ne.s32.totalorder %s120, %s121
    %p135 = scmp.eq.s32.totalorder %s15, 1
    %p136 = por %p134, %p135
    %p138 = scmp.ne.s32.totalorder %s121, %s137
    %p139 = scmp.eq.s32.totalorder %s15, 0
    %p140 = por %p138, %p139
    %p141 = scmp.le.s32.totalorder 1, %s9
    %p142 = scmp.lt.s32.totalorder %s9, 3
    %p143 = pnand %p141, %p142
    %p144 = pneg %p143
    // Predicated region
    $region9: #{plain_dyn_block2d.5} parent=5 // pred_check
      _
    $region10: #{plain_dyn_block2d.5} parent=5 // pred_check_branch
      %146 = sbr.rel (%p143) target = $region12
    $region11: #{plain_dyn_block2d.5} parent=5 // pred_region
      %s147 = ssub.s32 %s9, 1
    $region12: #{plain_dyn_block2d.5} parent=5 // pred_fallthru
      _
    %p148 = scmp.lt.s32.totalorder %s9, 2
    // Predicated region
    $region13: #{plain_dyn_block2d.5} parent=5 // pred_check
      %p149 = pneg %p148
    $region14: #{plain_dyn_block2d.5} parent=5 // pred_check_branch
      %151 = sbr.rel (%p149) target = $region16
    $region15: #{plain_dyn_block2d.5} parent=5 // pred_region
      // Predicated region
      $region17: #{plain_dyn_block2d.5} parent=15 // pred_check
        %p152 = pneg %p43
      $region18: #{plain_dyn_block2d.5} parent=15 // pred_check_branch
        %154 = sbr.rel (%p152) target = $region20
      $region19: #{plain_dyn_block2d.5} parent=15 // pred_region
        %s155 = smul.u32 2, %s17
        %p156 = scmp.lt.s32.totalorder %s16, 1
        %s157 = scalar_select %p156, %s16, 1
        %p158 = scmp.lt.s32.totalorder %s155, 1
        %s159 = scalar_select %p158, %s155, 1
        %s160 = smul.addr %s157, 2
        %s161 = sadd.s32 %s159, %s160
        %s162 = smul.addr %s161, 8
        %s163 = scalar_lea.vmem %s0, %s162
        %s164 = smul.u32 2, %s17
      $region20: #{plain_dyn_block2d.5} parent=15 // pred_fallthru
        _
      // Predicated region
      $region21: #{plain_dyn_block2d.5} parent=15 // pred_check
        %p165 = pneg %p71
      $region22: #{plain_dyn_block2d.5} parent=15 // pred_check_branch
        %167 = sbr.rel (%p165) target = $region24
      $region23: #{plain_dyn_block2d.5} parent=15 // pred_region
        %s168 = smul.u32 2, %s17
        %p169 = scmp.lt.s32.totalorder %s16, 1
        %s170 = scalar_select %p169, %s16, 1
        %p171 = scmp.lt.s32.totalorder %s168, 1
        %s172 = scalar_select %p171, %s168, 1
        %s173 = smul.addr %s170, 2
        %s174 = sadd.s32 %s172, %s173
        %s175 = smul.addr %s174, 8
        %s176 = scalar_lea.vmem %s1, %s175
        %s177 = smul.u32 2, %s17
      $region24: #{plain_dyn_block2d.5} parent=15 // pred_fallthru
        _
      // Predicated region
      $region25: #{plain_dyn_block2d.5} parent=15 // pred_check
        %p178 = pneg %p99
      $region26: #{plain_dyn_block2d.5} parent=15 // pred_check_branch
        %180 = sbr.rel (%p178) target = $region28
      $region27: #{plain_dyn_block2d.5} parent=15 // pred_region
        %s181 = smul.u32 2, %s17
        %p182 = scmp.lt.s32.totalorder %s16, 1
        %s183 = scalar_select %p182, %s16, 1
        %p184 = scmp.lt.s32.totalorder %s181, 1
        %s185 = scalar_select %p184, %s181, 1
        %s186 = smul.addr %s183, 2
        %s187 = sadd.s32 %s185, %s186
        %s188 = smul.addr %s187, 8
        %s189 = scalar_lea.vmem %s2, %s188
        %s190 = smul.u32 2, %s17
      $region28: #{plain_dyn_block2d.5} parent=15 // pred_fallthru
        _
    $region16: #{plain_dyn_block2d.5} parent=5 // pred_fallthru
      _
    %p191 = scmp.le.s32.totalorder 1, %s9
    %p192 = scmp.lt.s32.totalorder %s9, 3
    %p193 = pnand %p191, %p192
    %p194 = pneg %p193
    // Predicated region
    $region29: #{plain_dyn_block2d.5} parent=5 // pred_check
      _
    $region30: #{plain_dyn_block2d.5} parent=5 // pred_check_branch
      %196 = sbr.rel (%p193) target = $region32
    $region31: #{plain_dyn_block2d.5} parent=5 // pred_region
      %s197 = ssub.s32 %s9, 1
      %s198 = smul.u32 2, %s19
      %p199 = scmp.lt.s32.totalorder %s18, 1
      %s200 = scalar_select %p199, %s18, 1
      %p201 = scmp.lt.s32.totalorder %s198, 1
      %s202 = scalar_select %p201, %s198, 1
      %s203 = smul.addr %s200, 2
      %s204 = sadd.s32 %s202, %s203
      %s205 = smul.addr %s204, 8
      %s206 = scalar_lea.vmem %s0, %s205
      %p207 = pneg %p49
      %p208 = pneg %p46
      %s209 = smul.u32 2, %s19
      %p210 = scmp.lt.s32.totalorder %s18, 1
      %s211 = scalar_select %p210, %s18, 1
      %p212 = scmp.lt.s32.totalorder %s209, 1
      %s213 = scalar_select %p212, %s209, 1
      %s214 = smul.addr %s211, 2
      %s215 = sadd.s32 %s213, %s214
      %s216 = smul.addr %s215, 8
      %s217 = scalar_lea.vmem %s1, %s216
      %p218 = pneg %p77
      %p219 = pneg %p74
      %s220 = smul.u32 2, %s19
      %p221 = scmp.lt.s32.totalorder %s18, 1
      %s222 = scalar_select %p221, %s18, 1
      %p223 = scmp.lt.s32.totalorder %s220, 1
      %s224 = scalar_select %p223, %s220, 1
      %s225 = smul.addr %s222, 2
      %s226 = sadd.s32 %s224, %s225
      %s227 = smul.addr %s226, 8
      %s228 = scalar_lea.vmem %s2, %s227
      %p229 = pneg %p105
      %p230 = pneg %p102
      %p231 = pneg %p133
      %p232 = pneg %p130
      %s233 = smul.u32 2, %s19
      %p234 = scmp.lt.s32.totalorder %s18, 1
      %s235 = scalar_select %p234, %s18, 1
      %p236 = scmp.lt.s32.totalorder %s233, 1
      %s237 = scalar_select %p236, %s233, 1
      %s238 = smul.addr %s235, 2
      %s239 = sadd.s32 %s237, %s238
      %s240 = smul.addr %s239, 8
      %s241 = scalar_lea.vmem %s3, %s240
      %s242 = smul.u32 2, %s19
      %p243 = scmp.lt.s32.totalorder %s18, 1
      %s244 = scalar_select %p243, %s18, 1
      %p245 = scmp.lt.s32.totalorder %s242, 1
      %s246 = scalar_select %p245, %s242, 1
      %s247 = smul.addr %s244, 2
      %s248 = sadd.s32 %s246, %s247
      %s249 = smul.addr %s248, 8
      %s250 = scalar_lea.vmem %s0, %s249
      %s251 = smul.u32 2, %s19
      %s252 = smul.u32 2, %s19
      %p253 = scmp.lt.s32.totalorder %s18, 1
      %s254 = scalar_select %p253, %s18, 1
      %p255 = scmp.lt.s32.totalorder %s252, 1
      %s256 = scalar_select %p255, %s252, 1
      %s257 = smul.addr %s254, 2
      %s258 = sadd.s32 %s256, %s257
      %s259 = smul.addr %s258, 8
      %s260 = scalar_lea.vmem %s1, %s259
      %s261 = smul.u32 2, %s19
      %s262 = smul.u32 2, %s19
      %p263 = scmp.lt.s32.totalorder %s18, 1
      %s264 = scalar_select %p263, %s18, 1
      %p265 = scmp.lt.s32.totalorder %s262, 1
      %s266 = scalar_select %p265, %s262, 1
      %s267 = smul.addr %s264, 2
      %s268 = sadd.s32 %s266, %s267
      %s269 = smul.addr %s268, 8
      %s270 = scalar_lea.vmem %s2, %s269
      %s271 = smul.u32 2, %s19
      %s272 = smul.u32 2, %s19
      %p273 = scmp.lt.s32.totalorder %s18, 1
      %s274 = scalar_select %p273, %s18, 1
      %p275 = scmp.lt.s32.totalorder %s272, 1
      %s276 = scalar_select %p275, %s272, 1
      %s277 = smul.addr %s274, 2
      %s278 = sadd.s32 %s276, %s277
      %s279 = smul.addr %s278, 8
      %s280 = scalar_lea.vmem %s3, %s279
      %s281 = smul.u32 2, %s19
      %v282 = vld [vmem:[%s250] sm:$0xff]
      %v283 = vld [vmem:[%s250 + $0x8] sm:$0xff]
      %v284 = vld [vmem:[%s270] sm:$0xff]
      %v285 = vld [vmem:[%s270 + $0x8] sm:$0xff]
      %v286 = vadd.f32 %v282, %v284
      %v287 = vadd.f32 %v283, %v285
      %v288 = vld [vmem:[%s260] sm:$0xff]
      %v289 = vld [vmem:[%s260 + $0x8] sm:$0xff]
      %v290 = vsub.f32 %v286, %v288
      %v291 = vsub.f32 %v287, %v289
      %v292 = vmax.f32 %v290, 0.0
      %v293 = vmax.f32 %v291, 0.0
      %294 = vst [vmem:[%s280] sm:$0xff] %v292
      %295 = vst [vmem:[%s280 + $0x8] sm:$0xff] %v293
      %s296 = smul.u32 2, %s19
      %p297 = scmp.lt.s32.totalorder %s18, 1
      %s298 = scalar_select %p297, %s18, 1
      %p299 = scmp.lt.s32.totalorder %s296, 1
      %s300 = scalar_select %p299, %s296, 1
      %s301 = smul.addr %s298, 2
      %s302 = sadd.s32 %s300, %s301
      %s303 = smul.addr %s302, 8
      %s304 = scalar_lea.vmem %s3, %s303
      // Predicated region
      $region33: #{plain_dyn_block2d.5} parent=31 // pred_check
        %p305 = pneg %p130
      $region34: #{plain_dyn_block2d.5} parent=31 // pred_check_branch
        %307 = sbr.rel (%p305) target = $region36
      $region35: #{plain_dyn_block2d.5} parent=31 // pred_region
        %s308 = smul.u32 2, %s19
      $region36: #{plain_dyn_block2d.5} parent=31 // pred_fallthru
        _
    $region32: #{plain_dyn_block2d.5} parent=5 // pred_fallthru
      _
    %p309 = scmp.le.s32.totalorder 2, %s9
    // Predicated region
    $region37: #{plain_dyn_block2d.5} parent=5 // pred_check
      %p310 = pneg %p309
    $region38: #{plain_dyn_block2d.5} parent=5 // pred_check_branch
      %312 = sbr.rel (%p310) target = $region40
    $region39: #{plain_dyn_block2d.5} parent=5 // pred_region
      %s313 = ssub.s32 %s9, 2
      // Predicated region
      $region41: #{plain_dyn_block2d.5} parent=39 // pred_check
        %p314 = pneg %p136
      $region42: #{plain_dyn_block2d.5} parent=39 // pred_check_branch
        %316 = sbr.rel (%p314) target = $region44
      $region43: #{plain_dyn_block2d.5} parent=39 // pred_region
        %s317 = smul.u32 2, %s21
        %p318 = scmp.lt.s32.totalorder %s20, 1
        %s319 = scalar_select %p318, %s20, 1
        %p320 = scmp.lt.s32.totalorder %s317, 1
        %s321 = scalar_select %p320, %s317, 1
        %s322 = smul.addr %s319, 2
        %s323 = sadd.s32 %s321, %s322
        %s324 = smul.addr %s323, 8
        %s325 = scalar_lea.vmem %s3, %s324
      $region44: #{plain_dyn_block2d.5} parent=39 // pred_fallthru
        _
    $region40: #{plain_dyn_block2d.5} parent=5 // pred_fallthru
      _
  $region6: #{plain_dyn_block2d.5} parent=0 // loop_footer
    %s13 = sadd.s32 1, %s9
  $region7: #{plain_dyn_block2d.5} parent=0 // loop_footer_branch
    %8 = sbr.rel target = $region3
  $region8: #{plain_dyn_block2d.5} parent=0 // loop_exit
    _

</llo_original>
